<compile_context>
chip_gen: v5e
topology: v5e:2x2
jax: 0.10.0
libtpu: 0.0.40
codegen_flags: <defaults>
</compile_context>

<pallas_src>
import functools

import jax
import jax.numpy as jnp
from jax import lax
from jax.experimental import pallas as pl
from jax.experimental.pallas import tpu as pltpu


# ----------------------------- Pallas kernel -------------------------------

def mh_attention_kernel(q_ref, k_ref, v_ref, w_ref, b_ref, g_ref, bt_ref,
                        rg_ref, out_ref, s_q, s_k, s_v, s_att, *, heads):
    # q_ref/k_ref/v_ref: (B, C, N)   inputs, channels-first (N in lanes)
    # w_ref:  (4, C, C)  1x1-conv weights   [to_q, to_k, to_v, conv]
    # b_ref:  (4, C, 1)  1x1-conv biases
    # g_ref:  (4, C, 1)  BatchNorm weights (gamma)
    # bt_ref: (4, C, 1)  BatchNorm biases  (beta)
    # rg_ref: (1,) SMEM  residual scale (self.gamma, a learned scalar)
    # out_ref:(B, C, N)
    # s_q/s_k/s_v/s_att: (B, C, N) f32 VMEM scratch
    B, C, N = q_ref.shape
    hd = C // heads
    eps = 1e-5

    def conv_bn_relu(src, dst, j):
        # 1x1 conv == per-batch (C,C) @ (C,N) matmul (MXU), bias broadcast.
        for b in range(B):
            dst[b] = (jnp.dot(w_ref[j], src[b],
                              preferred_element_type=jnp.float32) + b_ref[j])
        # BatchNorm2d, training mode: per-channel stats over all B*N positions
        # (biased variance), then affine + ReLU.  Computed fully in-kernel.
        y = dst[...]                                           # (B, C, N)
        cnt = float(B * N)
        mean = jnp.sum(jnp.sum(y, axis=0, keepdims=True),
                       axis=2, keepdims=True) / cnt            # (1, C, 1)
        d = y - mean
        var = jnp.sum(jnp.sum(d * d, axis=0, keepdims=True),
                      axis=2, keepdims=True) / cnt             # (1, C, 1)
        yn = d * lax.rsqrt(var + eps)
        dst[...] = jnp.maximum(yn * g_ref[j] + bt_ref[j], 0.0)

    # ---- Q / K / V projections (stay resident in VMEM scratch) ----
    conv_bn_relu(q_ref, s_q, 0)
    conv_bn_relu(k_ref, s_k, 1)
    conv_bn_relu(v_ref, s_v, 2)

    # ---- per-head attention; heads are inherently sequential because head i
    #      gates its values with sigmoid of head i-1's output ----
    for i in range(heads):
        lo = i * hd
        hi = lo + hd
        for b in range(B):
            qh = s_q[b, lo:hi, :]                              # (hd, N)
            kh = s_k[b, lo:hi, :]                              # (hd, N)
            vh = s_v[b, lo:hi, :]                              # (hd, N)
            # scores[n, m] = sum_c q[c, n] * k[c, m]
            scores = lax.dot_general(qh, kh, (((0,), (0,)), ((), ())),
                                     preferred_element_type=jnp.float32)
            m = jnp.max(scores, axis=-1, keepdims=True)
            e = jnp.exp(scores - m)
            att = e / jnp.sum(e, axis=-1, keepdims=True)       # softmax, dim=-1
            if i == 0:
                v_used = vh
            else:
                prev = s_att[b, lo - hd:lo, :]                 # head i-1 output
                gate = 1.0 / (1.0 + jnp.exp(-prev))            # sigmoid
                v_used = vh * gate
            # out[c, n] = sum_m v[c, m] * att[n, m]   ( == v @ att^T )
            out_i = lax.dot_general(v_used, att, (((1,), (1,)), ((), ())),
                                    preferred_element_type=jnp.float32)
            s_att[b, lo:hi, :] = out_i

    # ---- output projection (conv + BN + ReLU), staged through out_ref ----
    conv_bn_relu(s_att, out_ref, 3)
    # ---- residual:  v + gamma * out ----
    out_ref[...] = v_ref[...] + rg_ref[0] * out_ref[...]


# ------------------------------- wrapper ------------------------------------

@functools.partial(jax.jit, static_argnames=("heads",))
def mh_attention_forward(q, k, v, w_all, b_all, g_all, bt_all, res_gamma, *,
                         heads):
    """Pallas implementation of MH_Attention.forward.

    q, k, v: (B, C, N, 1) float32 (NCHW, W==1)
    w_all:   (4, C, C)   1x1-conv weights for [to_q, to_k, to_v, conv]
    b_all:   (4, C)      conv biases
    g_all:   (4, C)      BN weights
    bt_all:  (4, C)      BN biases
    res_gamma: scalar    self.gamma
    returns (B, C, N, 1) float32
    """
    B, C, N, _ = q.shape
    assert C % heads == 0
    # metadata-only reshapes (no transposes)
    q3, k3, v3 = q[..., 0], k[..., 0], v[..., 0]               # (B, C, N)
    b3 = b_all.reshape(4, C, 1)
    g3 = g_all.reshape(4, C, 1)
    bt3 = bt_all.reshape(4, C, 1)
    rg = jnp.asarray(res_gamma, jnp.float32).reshape(1)

    full3 = lambda i: (0, 0, 0)
    out = pl.pallas_call(
        functools.partial(mh_attention_kernel, heads=heads),
        out_shape=jax.ShapeDtypeStruct((B, C, N), jnp.float32),
        grid=(1,),
        in_specs=[
            pl.BlockSpec((B, C, N), full3),                    # q
            pl.BlockSpec((B, C, N), full3),                    # k
            pl.BlockSpec((B, C, N), full3),                    # v
            pl.BlockSpec((4, C, C), full3),                    # conv weights
            pl.BlockSpec((4, C, 1), full3),                    # conv biases
            pl.BlockSpec((4, C, 1), full3),                    # BN gammas
            pl.BlockSpec((4, C, 1), full3),                    # BN betas
            pl.BlockSpec(memory_space=pltpu.MemorySpace.SMEM), # residual gamma
        ],
        out_specs=pl.BlockSpec((B, C, N), full3),
        scratch_shapes=[pltpu.VMEM((B, C, N), jnp.float32)] * 4,
        compiler_params=pltpu.CompilerParams(
            dimension_semantics=("arbitrary",)),
    )(q3, k3, v3, w_all, b3, g3, bt3, rg)
    return out[..., None]                                      # (B, C, N, 1)


# ------------------------- pure-JAX reference --------------------------------

def ref_forward(q, k, v, w_all, b_all, g_all, bt_all, res_gamma, *, heads):
    """Pure-JAX mirror of the PyTorch forward (training-mode BN)."""
    B, C, N, _ = q.shape
    hd = C // heads

    def conv_bn_relu(xc, j):
        y = jnp.einsum('oc,bcn->bon', w_all[j], xc) + b_all[j][None, :, None]
        mean = y.mean(axis=(0, 2), keepdims=True)
        var = ((y - mean) ** 2).mean(axis=(0, 2), keepdims=True)
        y = (y - mean) / jnp.sqrt(var + 1e-5)
        y = y * g_all[j][None, :, None] + bt_all[j][None, :, None]
        return jnp.maximum(y, 0.0)

    q1 = conv_bn_relu(q[..., 0], 0)
    k1 = conv_bn_relu(k[..., 0], 1)
    v1 = conv_bn_relu(v[..., 0], 2)

    outs = []
    for i in range(heads):
        sl = slice(i * hd, (i + 1) * hd)
        scores = jnp.einsum('bcn,bcm->bnm', q1[:, sl, :], k1[:, sl, :])
        att = jax.nn.softmax(scores, axis=2)
        if i == 0:
            vu = v1[:, sl, :]
        else:
            vu = v1[:, sl, :] * jax.nn.sigmoid(outs[i - 1])
        outs.append(jnp.einsum('bcm,bnm->bcn', vu, att))
    ra = jnp.concatenate(outs, axis=1)                         # (B, C, N)

    y = conv_bn_relu(ra, 3)
    out = v[..., 0] + res_gamma * y
    return out[..., None]


# --------------------------------- main --------------------------------------

if __name__ == "__main__":
    B, N = 2, 16
    heads, dim_head = 2, 8
    C = heads * dim_head                                       # in_channel = 16

    key = jax.random.PRNGKey(0)
    ks = jax.random.split(key, 7)
    q = jax.random.normal(ks[0], (B, C, N, 1), dtype=jnp.float32)
    k = jax.random.normal(ks[1], (B, C, N, 1), dtype=jnp.float32)
    v = jax.random.normal(ks[2], (B, C, N, 1), dtype=jnp.float32)

    # parameters for [to_q, to_k, to_v, conv]: 1x1 conv W/b and BN gamma/beta
    w_all = 0.1 * jax.random.normal(ks[3], (4, C, C), dtype=jnp.float32)
    b_all = 0.1 * jax.random.normal(ks[4], (4, C), dtype=jnp.float32)
    g_all = 1.0 + 0.1 * jax.random.normal(ks[5], (4, C), dtype=jnp.float32)
    bt_all = 0.1 * jax.random.normal(ks[6], (4, C), dtype=jnp.float32)
    # self.gamma is initialized to 0 in the module; use a nonzero value here so
    # the attention path actually contributes to the checked output.
    res_gamma = jnp.asarray(0.5, jnp.float32)

    out = mh_attention_forward(q, k, v, w_all, b_all, g_all, bt_all, res_gamma,
                               heads=heads)
    out = jax.block_until_ready(out)

    ref = ref_forward(q, k, v, w_all, b_all, g_all, bt_all, res_gamma,
                      heads=heads)
    err = float(jnp.max(jnp.abs(out - ref)))
    assert out.shape == (B, C, N, 1), out.shape
    assert err < 2e-3, f"max abs err {err}"
    print("KERNEL_OK")
</pallas_src>

<mosaic_0001>
module attributes {stable_mosaic.version = 11 : i64} {
  func.func @mh_attention_kernel(%arg0: i32, %arg1: memref<2x16x16xf32, #tpu.memory_space<vmem>>, %arg2: memref<2x16x16xf32, #tpu.memory_space<vmem>>, %arg3: memref<2x16x16xf32, #tpu.memory_space<vmem>>, %arg4: memref<4x16x16xf32, #tpu.memory_space<vmem>>, %arg5: memref<4x16x1xf32, #tpu.memory_space<vmem>>, %arg6: memref<4x16x1xf32, #tpu.memory_space<vmem>>, %arg7: memref<4x16x1xf32, #tpu.memory_space<vmem>>, %arg8: memref<1xf32, #tpu.memory_space<smem>>, %arg9: memref<2x16x16xf32, #tpu.memory_space<vmem>>, %arg10: memref<2x16x16xf32, #tpu.memory_space<vmem>>, %arg11: memref<2x16x16xf32, #tpu.memory_space<vmem>>, %arg12: memref<2x16x16xf32, #tpu.memory_space<vmem>>, %arg13: memref<2x16x16xf32, #tpu.memory_space<vmem>>) attributes {dimension_semantics = [#tpu.dimension_semantics<arbitrary>], iteration_bounds = array<i64: 1>, scalar_prefetch = 0 : i64, scratch_operands = 4 : i64, tpu.core_type = #tpu.core_type<tc>, window_params = [{pipeline_mode = #tpu.pipeline_mode<synchronous>, transform_indices = @transform_0, window_bounds = array<i64: 2, 16, 16>}, {pipeline_mode = #tpu.pipeline_mode<synchronous>, transform_indices = @transform_1, window_bounds = array<i64: 2, 16, 16>}, {pipeline_mode = #tpu.pipeline_mode<synchronous>, transform_indices = @transform_2, window_bounds = array<i64: 2, 16, 16>}, {pipeline_mode = #tpu.pipeline_mode<synchronous>, transform_indices = @transform_3, window_bounds = array<i64: 4, 16, 16>}, {pipeline_mode = #tpu.pipeline_mode<synchronous>, transform_indices = @transform_4, window_bounds = array<i64: 4, 16, 1>}, {pipeline_mode = #tpu.pipeline_mode<synchronous>, transform_indices = @transform_5, window_bounds = array<i64: 4, 16, 1>}, {pipeline_mode = #tpu.pipeline_mode<synchronous>, transform_indices = @transform_6, window_bounds = array<i64: 4, 16, 1>}, {transform_indices = @transform_7, window_bounds = array<i64: 1>}, {pipeline_mode = #tpu.pipeline_mode<synchronous>, transform_indices = @transform_8, window_bounds = array<i64: 2, 16, 16>}]} {
    %c0 = arith.constant 0 : index
    %c0_0 = arith.constant 0 : index
    %c0_1 = arith.constant 0 : index
    %0 = vector.load %arg4[%c0, %c0_0, %c0_1] : memref<4x16x16xf32, #tpu.memory_space<vmem>>, vector<1x16x16xf32>
    %1 = vector.shape_cast %0 : vector<1x16x16xf32> to vector<16x16xf32>
    %c0_2 = arith.constant 0 : index
    %c0_3 = arith.constant 0 : index
    %c0_4 = arith.constant 0 : index
    %2 = vector.load %arg1[%c0_2, %c0_3, %c0_4] : memref<2x16x16xf32, #tpu.memory_space<vmem>>, vector<1x16x16xf32>
    %3 = vector.shape_cast %2 : vector<1x16x16xf32> to vector<16x16xf32>
    %cst = arith.constant dense<0.000000e+00> : vector<16x16xf32>
    %4 = tpu.matmul %1, %3, %cst {dimension_numbers = #tpu.dot_dimension_numbers<[1], [0], [0], [1], [0, 0, 1, 1], [], []>} : vector<16x16xf32>, vector<16x16xf32>, vector<16x16xf32> -> vector<16x16xf32>
    %c0_5 = arith.constant 0 : index
    %c0_6 = arith.constant 0 : index
    %c0_7 = arith.constant 0 : index
    %5 = vector.load %arg5[%c0_5, %c0_6, %c0_7] : memref<4x16x1xf32, #tpu.memory_space<vmem>>, vector<1x16x1xf32>
    %6 = vector.shape_cast %5 : vector<1x16x1xf32> to vector<16x1xf32>
    %7 = vector.broadcast %6 : vector<16x1xf32> to vector<16x16xf32>
    %8 = arith.addf %4, %7 : vector<16x16xf32>
    %c0_8 = arith.constant 0 : index
    %c0_9 = arith.constant 0 : index
    %c0_10 = arith.constant 0 : index
    %9 = vector.load %arg10[%c0_8, %c0_9, %c0_10] : memref<2x16x16xf32, #tpu.memory_space<vmem>>, vector<1x16x16xf32>
    %10 = vector.shape_cast %9 : vector<1x16x16xf32> to vector<16x16xf32>
    %11 = vector.shape_cast %8 : vector<16x16xf32> to vector<1x16x16xf32>
    tpu.vector_store %arg10[%c0_8, %c0_9, %c0_10], %11 {strides = array<i32>} : memref<2x16x16xf32, #tpu.memory_space<vmem>>, vector<1x16x16xf32>,
    %c0_11 = arith.constant 0 : index
    %c0_12 = arith.constant 0 : index
    %c0_13 = arith.constant 0 : index
    %12 = vector.load %arg4[%c0_11, %c0_12, %c0_13] : memref<4x16x16xf32, #tpu.memory_space<vmem>>, vector<1x16x16xf32>
    %13 = vector.shape_cast %12 : vector<1x16x16xf32> to vector<16x16xf32>
    %c1 = arith.constant 1 : index
    %c0_14 = arith.constant 0 : index
    %c0_15 = arith.constant 0 : index
    %14 = vector.load %arg1[%c1, %c0_14, %c0_15] : memref<2x16x16xf32, #tpu.memory_space<vmem>>, vector<1x16x16xf32>
    %15 = vector.shape_cast %14 : vector<1x16x16xf32> to vector<16x16xf32>
    %cst_16 = arith.constant dense<0.000000e+00> : vector<16x16xf32>
    %16 = tpu.matmul %13, %15, %cst_16 {dimension_numbers = #tpu.dot_dimension_numbers<[1], [0], [0], [1], [0, 0, 1, 1], [], []>} : vector<16x16xf32>, vector<16x16xf32>, vector<16x16xf32> -> vector<16x16xf32>
    %c0_17 = arith.constant 0 : index
    %c0_18 = arith.constant 0 : index
    %c0_19 = arith.constant 0 : index
    %17 = vector.load %arg5[%c0_17, %c0_18, %c0_19] : memref<4x16x1xf32, #tpu.memory_space<vmem>>, vector<1x16x1xf32>
    %18 = vector.shape_cast %17 : vector<1x16x1xf32> to vector<16x1xf32>
    %19 = vector.broadcast %18 : vector<16x1xf32> to vector<16x16xf32>
    %20 = arith.addf %16, %19 : vector<16x16xf32>
    %c1_20 = arith.constant 1 : index
    %c0_21 = arith.constant 0 : index
    %c0_22 = arith.constant 0 : index
    %21 = vector.load %arg10[%c1_20, %c0_21, %c0_22] : memref<2x16x16xf32, #tpu.memory_space<vmem>>, vector<1x16x16xf32>
    %22 = vector.shape_cast %21 : vector<1x16x16xf32> to vector<16x16xf32>
    %23 = vector.shape_cast %20 : vector<16x16xf32> to vector<1x16x16xf32>
    tpu.vector_store %arg10[%c1_20, %c0_21, %c0_22], %23 {strides = array<i32>} : memref<2x16x16xf32, #tpu.memory_space<vmem>>, vector<1x16x16xf32>,
    %c0_23 = arith.constant 0 : index
    %c0_24 = arith.constant 0 : index
    %c0_25 = arith.constant 0 : index
    %24 = vector.load %arg10[%c0_23, %c0_24, %c0_25] : memref<2x16x16xf32, #tpu.memory_space<vmem>>, vector<2x16x16xf32>
    %cst_26 = arith.constant dense<0.000000e+00> : vector<16x16xf32>
    %25 = vector.multi_reduction <add>, %24, %cst_26 [0] : vector<2x16x16xf32> to vector<16x16xf32>
    %26 = vector.shape_cast %25 : vector<16x16xf32> to vector<1x16x16xf32>
    %cst_27 = arith.constant dense<0.000000e+00> : vector<1x16xf32>
    %27 = vector.multi_reduction <add>, %26, %cst_27 [2] : vector<1x16x16xf32> to vector<1x16xf32>
    %28 = vector.shape_cast %27 : vector<1x16xf32> to vector<1x16x1xf32>
    %cst_28 = arith.constant 3.200000e+01 : f32
    %29 = vector.broadcast %cst_28 : f32 to vector<1x16x1xf32>
    %30 = arith.divf %28, %29 : vector<1x16x1xf32>
    %31 = vector.broadcast %30 : vector<1x16x1xf32> to vector<2x16x16xf32>
    %32 = arith.subf %24, %31 : vector<2x16x16xf32>
    %33 = arith.mulf %32, %32 : vector<2x16x16xf32>
    %cst_29 = arith.constant dense<0.000000e+00> : vector<16x16xf32>
    %34 = vector.multi_reduction <add>, %33, %cst_29 [0] : vector<2x16x16xf32> to vector<16x16xf32>
    %35 = vector.shape_cast %34 : vector<16x16xf32> to vector<1x16x16xf32>
    %cst_30 = arith.constant dense<0.000000e+00> : vector<1x16xf32>
    %36 = vector.multi_reduction <add>, %35, %cst_30 [2] : vector<1x16x16xf32> to vector<1x16xf32>
    %37 = vector.shape_cast %36 : vector<1x16xf32> to vector<1x16x1xf32>
    %cst_31 = arith.constant 3.200000e+01 : f32
    %38 = vector.broadcast %cst_31 : f32 to vector<1x16x1xf32>
    %39 = arith.divf %37, %38 : vector<1x16x1xf32>
    %cst_32 = arith.constant 9.99999974E-6 : f32
    %40 = vector.broadcast %cst_32 : f32 to vector<1x16x1xf32>
    %41 = arith.addf %39, %40 : vector<1x16x1xf32>
    %42 = math.rsqrt %41 : vector<1x16x1xf32>
    %43 = vector.broadcast %42 : vector<1x16x1xf32> to vector<2x16x16xf32>
    %44 = arith.mulf %32, %43 : vector<2x16x16xf32>
    %c0_33 = arith.constant 0 : index
    %c0_34 = arith.constant 0 : index
    %c0_35 = arith.constant 0 : index
    %45 = vector.load %arg6[%c0_33, %c0_34, %c0_35] : memref<4x16x1xf32, #tpu.memory_space<vmem>>, vector<1x16x1xf32>
    %46 = vector.shape_cast %45 : vector<1x16x1xf32> to vector<16x1xf32>
    %47 = vector.shape_cast %46 : vector<16x1xf32> to vector<1x16x1xf32>
    %48 = vector.broadcast %47 : vector<1x16x1xf32> to vector<2x16x16xf32>
    %49 = arith.mulf %44, %48 : vector<2x16x16xf32>
    %c0_36 = arith.constant 0 : index
    %c0_37 = arith.constant 0 : index
    %c0_38 = arith.constant 0 : index
    %50 = vector.load %arg7[%c0_36, %c0_37, %c0_38] : memref<4x16x1xf32, #tpu.memory_space<vmem>>, vector<1x16x1xf32>
    %51 = vector.shape_cast %50 : vector<1x16x1xf32> to vector<16x1xf32>
    %52 = vector.shape_cast %51 : vector<16x1xf32> to vector<1x16x1xf32>
    %53 = vector.broadcast %52 : vector<1x16x1xf32> to vector<2x16x16xf32>
    %54 = arith.addf %49, %53 : vector<2x16x16xf32>
    %cst_39 = arith.constant 0.000000e+00 : f32
    %55 = vector.broadcast %cst_39 : f32 to vector<2x16x16xf32>
    %56 = arith.maximumf %54, %55 : vector<2x16x16xf32>
    %c0_40 = arith.constant 0 : index
    %c0_41 = arith.constant 0 : index
    %c0_42 = arith.constant 0 : index
    %57 = vector.load %arg10[%c0_40, %c0_41, %c0_42] : memref<2x16x16xf32, #tpu.memory_space<vmem>>, vector<2x16x16xf32>
    tpu.vector_store %arg10[%c0_40, %c0_41, %c0_42], %56 {strides = array<i32>} : memref<2x16x16xf32, #tpu.memory_space<vmem>>, vector<2x16x16xf32>,
    %c1_43 = arith.constant 1 : index
    %c0_44 = arith.constant 0 : index
    %c0_45 = arith.constant 0 : index
    %58 = vector.load %arg4[%c1_43, %c0_44, %c0_45] : memref<4x16x16xf32, #tpu.memory_space<vmem>>, vector<1x16x16xf32>
    %59 = vector.shape_cast %58 : vector<1x16x16xf32> to vector<16x16xf32>
    %c0_46 = arith.constant 0 : index
    %c0_47 = arith.constant 0 : index
    %c0_48 = arith.constant 0 : index
    %60 = vector.load %arg2[%c0_46, %c0_47, %c0_48] : memref<2x16x16xf32, #tpu.memory_space<vmem>>, vector<1x16x16xf32>
    %61 = vector.shape_cast %60 : vector<1x16x16xf32> to vector<16x16xf32>
    %cst_49 = arith.constant dense<0.000000e+00> : vector<16x16xf32>
    %62 = tpu.matmul %59, %61, %cst_49 {dimension_numbers = #tpu.dot_dimension_numbers<[1], [0], [0], [1], [0, 0, 1, 1], [], []>} : vector<16x16xf32>, vector<16x16xf32>, vector<16x16xf32> -> vector<16x16xf32>
    %c1_50 = arith.constant 1 : index
    %c0_51 = arith.constant 0 : index
    %c0_52 = arith.constant 0 : index
    %63 = vector.load %arg5[%c1_50, %c0_51, %c0_52] : memref<4x16x1xf32, #tpu.memory_space<vmem>>, vector<1x16x1xf32>
    %64 = vector.shape_cast %63 : vector<1x16x1xf32> to vector<16x1xf32>
    %65 = vector.broadcast %64 : vector<16x1xf32> to vector<16x16xf32>
    %66 = arith.addf %62, %65 : vector<16x16xf32>
    %c0_53 = arith.constant 0 : index
    %c0_54 = arith.constant 0 : index
    %c0_55 = arith.constant 0 : index
    %67 = vector.load %arg11[%c0_53, %c0_54, %c0_55] : memref<2x16x16xf32, #tpu.memory_space<vmem>>, vector<1x16x16xf32>
    %68 = vector.shape_cast %67 : vector<1x16x16xf32> to vector<16x16xf32>
    %69 = vector.shape_cast %66 : vector<16x16xf32> to vector<1x16x16xf32>
    tpu.vector_store %arg11[%c0_53, %c0_54, %c0_55], %69 {strides = array<i32>} : memref<2x16x16xf32, #tpu.memory_space<vmem>>, vector<1x16x16xf32>,
    %c1_56 = arith.constant 1 : index
    %c0_57 = arith.constant 0 : index
    %c0_58 = arith.constant 0 : index
    %70 = vector.load %arg4[%c1_56, %c0_57, %c0_58] : memref<4x16x16xf32, #tpu.memory_space<vmem>>, vector<1x16x16xf32>
    %71 = vector.shape_cast %70 : vector<1x16x16xf32> to vector<16x16xf32>
    %c1_59 = arith.constant 1 : index
    %c0_60 = arith.constant 0 : index
    %c0_61 = arith.constant 0 : index
    %72 = vector.load %arg2[%c1_59, %c0_60, %c0_61] : memref<2x16x16xf32, #tpu.memory_space<vmem>>, vector<1x16x16xf32>
    %73 = vector.shape_cast %72 : vector<1x16x16xf32> to vector<16x16xf32>
    %cst_62 = arith.constant dense<0.000000e+00> : vector<16x16xf32>
    %74 = tpu.matmul %71, %73, %cst_62 {dimension_numbers = #tpu.dot_dimension_numbers<[1], [0], [0], [1], [0, 0, 1, 1], [], []>} : vector<16x16xf32>, vector<16x16xf32>, vector<16x16xf32> -> vector<16x16xf32>
    %c1_63 = arith.constant 1 : index
    %c0_64 = arith.constant 0 : index
    %c0_65 = arith.constant 0 : index
    %75 = vector.load %arg5[%c1_63, %c0_64, %c0_65] : memref<4x16x1xf32, #tpu.memory_space<vmem>>, vector<1x16x1xf32>
    %76 = vector.shape_cast %75 : vector<1x16x1xf32> to vector<16x1xf32>
    %77 = vector.broadcast %76 : vector<16x1xf32> to vector<16x16xf32>
    %78 = arith.addf %74, %77 : vector<16x16xf32>
    %c1_66 = arith.constant 1 : index
    %c0_67 = arith.constant 0 : index
    %c0_68 = arith.constant 0 : index
    %79 = vector.load %arg11[%c1_66, %c0_67, %c0_68] : memref<2x16x16xf32, #tpu.memory_space<vmem>>, vector<1x16x16xf32>
    %80 = vector.shape_cast %79 : vector<1x16x16xf32> to vector<16x16xf32>
    %81 = vector.shape_cast %78 : vector<16x16xf32> to vector<1x16x16xf32>
    tpu.vector_store %arg11[%c1_66, %c0_67, %c0_68], %81 {strides = array<i32>} : memref<2x16x16xf32, #tpu.memory_space<vmem>>, vector<1x16x16xf32>,
    %c0_69 = arith.constant 0 : index
    %c0_70 = arith.constant 0 : index
    %c0_71 = arith.constant 0 : index
    %82 = vector.load %arg11[%c0_69, %c0_70, %c0_71] : memref<2x16x16xf32, #tpu.memory_space<vmem>>, vector<2x16x16xf32>
    %cst_72 = arith.constant dense<0.000000e+00> : vector<16x16xf32>
    %83 = vector.multi_reduction <add>, %82, %cst_72 [0] : vector<2x16x16xf32> to vector<16x16xf32>
    %84 = vector.shape_cast %83 : vector<16x16xf32> to vector<1x16x16xf32>
    %cst_73 = arith.constant dense<0.000000e+00> : vector<1x16xf32>
    %85 = vector.multi_reduction <add>, %84, %cst_73 [2] : vector<1x16x16xf32> to vector<1x16xf32>
    %86 = vector.shape_cast %85 : vector<1x16xf32> to vector<1x16x1xf32>
    %cst_74 = arith.constant 3.200000e+01 : f32
    %87 = vector.broadcast %cst_74 : f32 to vector<1x16x1xf32>
    %88 = arith.divf %86, %87 : vector<1x16x1xf32>
    %89 = vector.broadcast %88 : vector<1x16x1xf32> to vector<2x16x16xf32>
    %90 = arith.subf %82, %89 : vector<2x16x16xf32>
    %91 = arith.mulf %90, %90 : vector<2x16x16xf32>
    %cst_75 = arith.constant dense<0.000000e+00> : vector<16x16xf32>
    %92 = vector.multi_reduction <add>, %91, %cst_75 [0] : vector<2x16x16xf32> to vector<16x16xf32>
    %93 = vector.shape_cast %92 : vector<16x16xf32> to vector<1x16x16xf32>
    %cst_76 = arith.constant dense<0.000000e+00> : vector<1x16xf32>
    %94 = vector.multi_reduction <add>, %93, %cst_76 [2] : vector<1x16x16xf32> to vector<1x16xf32>
    %95 = vector.shape_cast %94 : vector<1x16xf32> to vector<1x16x1xf32>
    %cst_77 = arith.constant 3.200000e+01 : f32
    %96 = vector.broadcast %cst_77 : f32 to vector<1x16x1xf32>
    %97 = arith.divf %95, %96 : vector<1x16x1xf32>
    %cst_78 = arith.constant 9.99999974E-6 : f32
    %98 = vector.broadcast %cst_78 : f32 to vector<1x16x1xf32>
    %99 = arith.addf %97, %98 : vector<1x16x1xf32>
    %100 = math.rsqrt %99 : vector<1x16x1xf32>
    %101 = vector.broadcast %100 : vector<1x16x1xf32> to vector<2x16x16xf32>
    %102 = arith.mulf %90, %101 : vector<2x16x16xf32>
    %c1_79 = arith.constant 1 : index
    %c0_80 = arith.constant 0 : index
    %c0_81 = arith.constant 0 : index
    %103 = vector.load %arg6[%c1_79, %c0_80, %c0_81] : memref<4x16x1xf32, #tpu.memory_space<vmem>>, vector<1x16x1xf32>
    %104 = vector.shape_cast %103 : vector<1x16x1xf32> to vector<16x1xf32>
    %105 = vector.shape_cast %104 : vector<16x1xf32> to vector<1x16x1xf32>
    %106 = vector.broadcast %105 : vector<1x16x1xf32> to vector<2x16x16xf32>
    %107 = arith.mulf %102, %106 : vector<2x16x16xf32>
    %c1_82 = arith.constant 1 : index
    %c0_83 = arith.constant 0 : index
    %c0_84 = arith.constant 0 : index
    %108 = vector.load %arg7[%c1_82, %c0_83, %c0_84] : memref<4x16x1xf32, #tpu.memory_space<vmem>>, vector<1x16x1xf32>
    %109 = vector.shape_cast %108 : vector<1x16x1xf32> to vector<16x1xf32>
    %110 = vector.shape_cast %109 : vector<16x1xf32> to vector<1x16x1xf32>
    %111 = vector.broadcast %110 : vector<1x16x1xf32> to vector<2x16x16xf32>
    %112 = arith.addf %107, %111 : vector<2x16x16xf32>
    %cst_85 = arith.constant 0.000000e+00 : f32
    %113 = vector.broadcast %cst_85 : f32 to vector<2x16x16xf32>
    %114 = arith.maximumf %112, %113 : vector<2x16x16xf32>
    %c0_86 = arith.constant 0 : index
    %c0_87 = arith.constant 0 : index
    %c0_88 = arith.constant 0 : index
    %115 = vector.load %arg11[%c0_86, %c0_87, %c0_88] : memref<2x16x16xf32, #tpu.memory_space<vmem>>, vector<2x16x16xf32>
    tpu.vector_store %arg11[%c0_86, %c0_87, %c0_88], %114 {strides = array<i32>} : memref<2x16x16xf32, #tpu.memory_space<vmem>>, vector<2x16x16xf32>,
    %c2 = arith.constant 2 : index
    %c0_89 = arith.constant 0 : index
    %c0_90 = arith.constant 0 : index
    %116 = vector.load %arg4[%c2, %c0_89, %c0_90] : memref<4x16x16xf32, #tpu.memory_space<vmem>>, vector<1x16x16xf32>
    %117 = vector.shape_cast %116 : vector<1x16x16xf32> to vector<16x16xf32>
    %c0_91 = arith.constant 0 : index
    %c0_92 = arith.constant 0 : index
    %c0_93 = arith.constant 0 : index
    %118 = vector.load %arg3[%c0_91, %c0_92, %c0_93] : memref<2x16x16xf32, #tpu.memory_space<vmem>>, vector<1x16x16xf32>
    %119 = vector.shape_cast %118 : vector<1x16x16xf32> to vector<16x16xf32>
    %cst_94 = arith.constant dense<0.000000e+00> : vector<16x16xf32>
    %120 = tpu.matmul %117, %119, %cst_94 {dimension_numbers = #tpu.dot_dimension_numbers<[1], [0], [0], [1], [0, 0, 1, 1], [], []>} : vector<16x16xf32>, vector<16x16xf32>, vector<16x16xf32> -> vector<16x16xf32>
    %c2_95 = arith.constant 2 : index
    %c0_96 = arith.constant 0 : index
    %c0_97 = arith.constant 0 : index
    %121 = vector.load %arg5[%c2_95, %c0_96, %c0_97] : memref<4x16x1xf32, #tpu.memory_space<vmem>>, vector<1x16x1xf32>
    %122 = vector.shape_cast %121 : vector<1x16x1xf32> to vector<16x1xf32>
    %123 = vector.broadcast %122 : vector<16x1xf32> to vector<16x16xf32>
    %124 = arith.addf %120, %123 : vector<16x16xf32>
    %c0_98 = arith.constant 0 : index
    %c0_99 = arith.constant 0 : index
    %c0_100 = arith.constant 0 : index
    %125 = vector.load %arg12[%c0_98, %c0_99, %c0_100] : memref<2x16x16xf32, #tpu.memory_space<vmem>>, vector<1x16x16xf32>
    %126 = vector.shape_cast %125 : vector<1x16x16xf32> to vector<16x16xf32>
    %127 = vector.shape_cast %124 : vector<16x16xf32> to vector<1x16x16xf32>
    tpu.vector_store %arg12[%c0_98, %c0_99, %c0_100], %127 {strides = array<i32>} : memref<2x16x16xf32, #tpu.memory_space<vmem>>, vector<1x16x16xf32>,
    %c2_101 = arith.constant 2 : index
    %c0_102 = arith.constant 0 : index
    %c0_103 = arith.constant 0 : index
    %128 = vector.load %arg4[%c2_101, %c0_102, %c0_103] : memref<4x16x16xf32, #tpu.memory_space<vmem>>, vector<1x16x16xf32>
    %129 = vector.shape_cast %128 : vector<1x16x16xf32> to vector<16x16xf32>
    %c1_104 = arith.constant 1 : index
    %c0_105 = arith.constant 0 : index
    %c0_106 = arith.constant 0 : index
    %130 = vector.load %arg3[%c1_104, %c0_105, %c0_106] : memref<2x16x16xf32, #tpu.memory_space<vmem>>, vector<1x16x16xf32>
    %131 = vector.shape_cast %130 : vector<1x16x16xf32> to vector<16x16xf32>
    %cst_107 = arith.constant dense<0.000000e+00> : vector<16x16xf32>
    %132 = tpu.matmul %129, %131, %cst_107 {dimension_numbers = #tpu.dot_dimension_numbers<[1], [0], [0], [1], [0, 0, 1, 1], [], []>} : vector<16x16xf32>, vector<16x16xf32>, vector<16x16xf32> -> vector<16x16xf32>
    %c2_108 = arith.constant 2 : index
    %c0_109 = arith.constant 0 : index
    %c0_110 = arith.constant 0 : index
    %133 = vector.load %arg5[%c2_108, %c0_109, %c0_110] : memref<4x16x1xf32, #tpu.memory_space<vmem>>, vector<1x16x1xf32>
    %134 = vector.shape_cast %133 : vector<1x16x1xf32> to vector<16x1xf32>
    %135 = vector.broadcast %134 : vector<16x1xf32> to vector<16x16xf32>
    %136 = arith.addf %132, %135 : vector<16x16xf32>
    %c1_111 = arith.constant 1 : index
    %c0_112 = arith.constant 0 : index
    %c0_113 = arith.constant 0 : index
    %137 = vector.load %arg12[%c1_111, %c0_112, %c0_113] : memref<2x16x16xf32, #tpu.memory_space<vmem>>, vector<1x16x16xf32>
    %138 = vector.shape_cast %137 : vector<1x16x16xf32> to vector<16x16xf32>
    %139 = vector.shape_cast %136 : vector<16x16xf32> to vector<1x16x16xf32>
    tpu.vector_store %arg12[%c1_111, %c0_112, %c0_113], %139 {strides = array<i32>} : memref<2x16x16xf32, #tpu.memory_space<vmem>>, vector<1x16x16xf32>,
    %c0_114 = arith.constant 0 : index
    %c0_115 = arith.constant 0 : index
    %c0_116 = arith.constant 0 : index
    %140 = vector.load %arg12[%c0_114, %c0_115, %c0_116] : memref<2x16x16xf32, #tpu.memory_space<vmem>>, vector<2x16x16xf32>
    %cst_117 = arith.constant dense<0.000000e+00> : vector<16x16xf32>
    %141 = vector.multi_reduction <add>, %140, %cst_117 [0] : vector<2x16x16xf32> to vector<16x16xf32>
    %142 = vector.shape_cast %141 : vector<16x16xf32> to vector<1x16x16xf32>
    %cst_118 = arith.constant dense<0.000000e+00> : vector<1x16xf32>
    %143 = vector.multi_reduction <add>, %142, %cst_118 [2] : vector<1x16x16xf32> to vector<1x16xf32>
    %144 = vector.shape_cast %143 : vector<1x16xf32> to vector<1x16x1xf32>
    %cst_119 = arith.constant 3.200000e+01 : f32
    %145 = vector.broadcast %cst_119 : f32 to vector<1x16x1xf32>
    %146 = arith.divf %144, %145 : vector<1x16x1xf32>
    %147 = vector.broadcast %146 : vector<1x16x1xf32> to vector<2x16x16xf32>
    %148 = arith.subf %140, %147 : vector<2x16x16xf32>
    %149 = arith.mulf %148, %148 : vector<2x16x16xf32>
    %cst_120 = arith.constant dense<0.000000e+00> : vector<16x16xf32>
    %150 = vector.multi_reduction <add>, %149, %cst_120 [0] : vector<2x16x16xf32> to vector<16x16xf32>
    %151 = vector.shape_cast %150 : vector<16x16xf32> to vector<1x16x16xf32>
    %cst_121 = arith.constant dense<0.000000e+00> : vector<1x16xf32>
    %152 = vector.multi_reduction <add>, %151, %cst_121 [2] : vector<1x16x16xf32> to vector<1x16xf32>
    %153 = vector.shape_cast %152 : vector<1x16xf32> to vector<1x16x1xf32>
    %cst_122 = arith.constant 3.200000e+01 : f32
    %154 = vector.broadcast %cst_122 : f32 to vector<1x16x1xf32>
    %155 = arith.divf %153, %154 : vector<1x16x1xf32>
    %cst_123 = arith.constant 9.99999974E-6 : f32
    %156 = vector.broadcast %cst_123 : f32 to vector<1x16x1xf32>
    %157 = arith.addf %155, %156 : vector<1x16x1xf32>
    %158 = math.rsqrt %157 : vector<1x16x1xf32>
    %159 = vector.broadcast %158 : vector<1x16x1xf32> to vector<2x16x16xf32>
    %160 = arith.mulf %148, %159 : vector<2x16x16xf32>
    %c2_124 = arith.constant 2 : index
    %c0_125 = arith.constant 0 : index
    %c0_126 = arith.constant 0 : index
    %161 = vector.load %arg6[%c2_124, %c0_125, %c0_126] : memref<4x16x1xf32, #tpu.memory_space<vmem>>, vector<1x16x1xf32>
    %162 = vector.shape_cast %161 : vector<1x16x1xf32> to vector<16x1xf32>
    %163 = vector.shape_cast %162 : vector<16x1xf32> to vector<1x16x1xf32>
    %164 = vector.broadcast %163 : vector<1x16x1xf32> to vector<2x16x16xf32>
    %165 = arith.mulf %160, %164 : vector<2x16x16xf32>
    %c2_127 = arith.constant 2 : index
    %c0_128 = arith.constant 0 : index
    %c0_129 = arith.constant 0 : index
    %166 = vector.load %arg7[%c2_127, %c0_128, %c0_129] : memref<4x16x1xf32, #tpu.memory_space<vmem>>, vector<1x16x1xf32>
    %167 = vector.shape_cast %166 : vector<1x16x1xf32> to vector<16x1xf32>
    %168 = vector.shape_cast %167 : vector<16x1xf32> to vector<1x16x1xf32>
    %169 = vector.broadcast %168 : vector<1x16x1xf32> to vector<2x16x16xf32>
    %170 = arith.addf %165, %169 : vector<2x16x16xf32>
    %cst_130 = arith.constant 0.000000e+00 : f32
    %171 = vector.broadcast %cst_130 : f32 to vector<2x16x16xf32>
    %172 = arith.maximumf %170, %171 : vector<2x16x16xf32>
    %c0_131 = arith.constant 0 : index
    %c0_132 = arith.constant 0 : index
    %c0_133 = arith.constant 0 : index
    %173 = vector.load %arg12[%c0_131, %c0_132, %c0_133] : memref<2x16x16xf32, #tpu.memory_space<vmem>>, vector<2x16x16xf32>
    tpu.vector_store %arg12[%c0_131, %c0_132, %c0_133], %172 {strides = array<i32>} : memref<2x16x16xf32, #tpu.memory_space<vmem>>, vector<2x16x16xf32>,
    %c0_134 = arith.constant 0 : index
    %c0_135 = arith.constant 0 : index
    %c0_136 = arith.constant 0 : index
    %174 = vector.load %arg10[%c0_134, %c0_135, %c0_136] : memref<2x16x16xf32, #tpu.memory_space<vmem>>, vector<1x8x16xf32>
    %175 = vector.shape_cast %174 : vector<1x8x16xf32> to vector<8x16xf32>
    %c0_137 = arith.constant 0 : index
    %c0_138 = arith.constant 0 : index
    %c0_139 = arith.constant 0 : index
    %176 = vector.load %arg11[%c0_137, %c0_138, %c0_139] : memref<2x16x16xf32, #tpu.memory_space<vmem>>, vector<1x8x16xf32>
    %177 = vector.shape_cast %176 : vector<1x8x16xf32> to vector<8x16xf32>
    %c0_140 = arith.constant 0 : index
    %c0_141 = arith.constant 0 : index
    %c0_142 = arith.constant 0 : index
    %178 = vector.load %arg12[%c0_140, %c0_141, %c0_142] : memref<2x16x16xf32, #tpu.memory_space<vmem>>, vector<1x8x16xf32>
    %179 = vector.shape_cast %178 : vector<1x8x16xf32> to vector<8x16xf32>
    %cst_143 = arith.constant dense<0.000000e+00> : vector<16x16xf32>
    %180 = tpu.matmul %175, %177, %cst_143 {dimension_numbers = #tpu.dot_dimension_numbers<[0], [0], [1], [1], [0, 1, 1, 1], [], []>} : vector<8x16xf32>, vector<8x16xf32>, vector<16x16xf32> -> vector<16x16xf32>
    %cst_144 = arith.constant dense<0xFF800000> : vector<16xf32>
    %181 = vector.multi_reduction <maximumf>, %180, %cst_144 [1] : vector<16x16xf32> to vector<16xf32>
    %182 = vector.shape_cast %181 : vector<16xf32> to vector<16x1xf32>
    %183 = vector.broadcast %182 : vector<16x1xf32> to vector<16x16xf32>
    %184 = arith.subf %180, %183 : vector<16x16xf32>
    %185 = math.exp %184 : vector<16x16xf32>
    %cst_145 = arith.constant dense<0.000000e+00> : vector<16xf32>
    %186 = vector.multi_reduction <add>, %185, %cst_145 [1] : vector<16x16xf32> to vector<16xf32>
    %187 = vector.shape_cast %186 : vector<16xf32> to vector<16x1xf32>
    %188 = vector.broadcast %187 : vector<16x1xf32> to vector<16x16xf32>
    %189 = arith.divf %185, %188 : vector<16x16xf32>
    %cst_146 = arith.constant dense<0.000000e+00> : vector<8x16xf32>
    %190 = tpu.matmul %179, %189, %cst_146 {dimension_numbers = #tpu.dot_dimension_numbers<[1], [1], [0], [0], [0, 0, 1, 0], [], []>} : vector<8x16xf32>, vector<16x16xf32>, vector<8x16xf32> -> vector<8x16xf32>
    %c0_147 = arith.constant 0 : index
    %c0_148 = arith.constant 0 : index
    %c0_149 = arith.constant 0 : index
    %191 = vector.load %arg13[%c0_147, %c0_148, %c0_149] : memref<2x16x16xf32, #tpu.memory_space<vmem>>, vector<1x8x16xf32>
    %192 = vector.shape_cast %191 : vector<1x8x16xf32> to vector<8x16xf32>
    %193 = vector.shape_cast %190 : vector<8x16xf32> to vector<1x8x16xf32>
    tpu.vector_store %arg13[%c0_147, %c0_148, %c0_149], %193 {strides = array<i32>} : memref<2x16x16xf32, #tpu.memory_space<vmem>>, vector<1x8x16xf32>,
    %c1_150 = arith.constant 1 : index
    %c0_151 = arith.constant 0 : index
    %c0_152 = arith.constant 0 : index
    %194 = vector.load %arg10[%c1_150, %c0_151, %c0_152] : memref<2x16x16xf32, #tpu.memory_space<vmem>>, vector<1x8x16xf32>
    %195 = vector.shape_cast %194 : vector<1x8x16xf32> to vector<8x16xf32>
    %c1_153 = arith.constant 1 : index
    %c0_154 = arith.constant 0 : index
    %c0_155 = arith.constant 0 : index
    %196 = vector.load %arg11[%c1_153, %c0_154, %c0_155] : memref<2x16x16xf32, #tpu.memory_space<vmem>>, vector<1x8x16xf32>
    %197 = vector.shape_cast %196 : vector<1x8x16xf32> to vector<8x16xf32>
    %c1_156 = arith.constant 1 : index
    %c0_157 = arith.constant 0 : index
    %c0_158 = arith.constant 0 : index
    %198 = vector.load %arg12[%c1_156, %c0_157, %c0_158] : memref<2x16x16xf32, #tpu.memory_space<vmem>>, vector<1x8x16xf32>
    %199 = vector.shape_cast %198 : vector<1x8x16xf32> to vector<8x16xf32>
    %cst_159 = arith.constant dense<0.000000e+00> : vector<16x16xf32>
    %200 = tpu.matmul %195, %197, %cst_159 {dimension_numbers = #tpu.dot_dimension_numbers<[0], [0], [1], [1], [0, 1, 1, 1], [], []>} : vector<8x16xf32>, vector<8x16xf32>, vector<16x16xf32> -> vector<16x16xf32>
    %cst_160 = arith.constant dense<0xFF800000> : vector<16xf32>
    %201 = vector.multi_reduction <maximumf>, %200, %cst_160 [1] : vector<16x16xf32> to vector<16xf32>
    %202 = vector.shape_cast %201 : vector<16xf32> to vector<16x1xf32>
    %203 = vector.broadcast %202 : vector<16x1xf32> to vector<16x16xf32>
    %204 = arith.subf %200, %203 : vector<16x16xf32>
    %205 = math.exp %204 : vector<16x16xf32>
    %cst_161 = arith.constant dense<0.000000e+00> : vector<16xf32>
    %206 = vector.multi_reduction <add>, %205, %cst_161 [1] : vector<16x16xf32> to vector<16xf32>
    %207 = vector.shape_cast %206 : vector<16xf32> to vector<16x1xf32>
    %208 = vector.broadcast %207 : vector<16x1xf32> to vector<16x16xf32>
    %209 = arith.divf %205, %208 : vector<16x16xf32>
    %cst_162 = arith.constant dense<0.000000e+00> : vector<8x16xf32>
    %210 = tpu.matmul %199, %209, %cst_162 {dimension_numbers = #tpu.dot_dimension_numbers<[1], [1], [0], [0], [0, 0, 1, 0], [], []>} : vector<8x16xf32>, vector<16x16xf32>, vector<8x16xf32> -> vector<8x16xf32>
    %c1_163 = arith.constant 1 : index
    %c0_164 = arith.constant 0 : index
    %c0_165 = arith.constant 0 : index
    %211 = vector.load %arg13[%c1_163, %c0_164, %c0_165] : memref<2x16x16xf32, #tpu.memory_space<vmem>>, vector<1x8x16xf32>
    %212 = vector.shape_cast %211 : vector<1x8x16xf32> to vector<8x16xf32>
    %213 = vector.shape_cast %210 : vector<8x16xf32> to vector<1x8x16xf32>
    tpu.vector_store %arg13[%c1_163, %c0_164, %c0_165], %213 {strides = array<i32>} : memref<2x16x16xf32, #tpu.memory_space<vmem>>, vector<1x8x16xf32>,
    %c0_166 = arith.constant 0 : index
    %c8 = arith.constant 8 : index
    %c0_167 = arith.constant 0 : index
    %214 = vector.load %arg10[%c0_166, %c8, %c0_167] : memref<2x16x16xf32, #tpu.memory_space<vmem>>, vector<1x8x16xf32>
    %215 = vector.shape_cast %214 : vector<1x8x16xf32> to vector<8x16xf32>
    %c0_168 = arith.constant 0 : index
    %c8_169 = arith.constant 8 : index
    %c0_170 = arith.constant 0 : index
    %216 = vector.load %arg11[%c0_168, %c8_169, %c0_170] : memref<2x16x16xf32, #tpu.memory_space<vmem>>, vector<1x8x16xf32>
    %217 = vector.shape_cast %216 : vector<1x8x16xf32> to vector<8x16xf32>
    %c0_171 = arith.constant 0 : index
    %c8_172 = arith.constant 8 : index
    %c0_173 = arith.constant 0 : index
    %218 = vector.load %arg12[%c0_171, %c8_172, %c0_173] : memref<2x16x16xf32, #tpu.memory_space<vmem>>, vector<1x8x16xf32>
    %219 = vector.shape_cast %218 : vector<1x8x16xf32> to vector<8x16xf32>
    %cst_174 = arith.constant dense<0.000000e+00> : vector<16x16xf32>
    %220 = tpu.matmul %215, %217, %cst_174 {dimension_numbers = #tpu.dot_dimension_numbers<[0], [0], [1], [1], [0, 1, 1, 1], [], []>} : vector<8x16xf32>, vector<8x16xf32>, vector<16x16xf32> -> vector<16x16xf32>
    %cst_175 = arith.constant dense<0xFF800000> : vector<16xf32>
    %221 = vector.multi_reduction <maximumf>, %220, %cst_175 [1] : vector<16x16xf32> to vector<16xf32>
    %222 = vector.shape_cast %221 : vector<16xf32> to vector<16x1xf32>
    %223 = vector.broadcast %222 : vector<16x1xf32> to vector<16x16xf32>
    %224 = arith.subf %220, %223 : vector<16x16xf32>
    %225 = math.exp %224 : vector<16x16xf32>
    %cst_176 = arith.constant dense<0.000000e+00> : vector<16xf32>
    %226 = vector.multi_reduction <add>, %225, %cst_176 [1] : vector<16x16xf32> to vector<16xf32>
    %227 = vector.shape_cast %226 : vector<16xf32> to vector<16x1xf32>
    %228 = vector.broadcast %227 : vector<16x1xf32> to vector<16x16xf32>
    %229 = arith.divf %225, %228 : vector<16x16xf32>
    %c0_177 = arith.constant 0 : index
    %c0_178 = arith.constant 0 : index
    %c0_179 = arith.constant 0 : index
    %230 = vector.load %arg13[%c0_177, %c0_178, %c0_179] : memref<2x16x16xf32, #tpu.memory_space<vmem>>, vector<1x8x16xf32>
    %231 = vector.shape_cast %230 : vector<1x8x16xf32> to vector<8x16xf32>
    %cst_180 = arith.constant 0.000000e+00 : f32
    %232 = vector.broadcast %cst_180 : f32 to vector<8x16xf32>
    %233 = arith.subf %232, %231 : vector<8x16xf32>
    %234 = math.exp %233 : vector<8x16xf32>
    %cst_181 = arith.constant 1.000000e+00 : f32
    %235 = vector.broadcast %cst_181 : f32 to vector<8x16xf32>
    %236 = arith.addf %235, %234 : vector<8x16xf32>
    %cst_182 = arith.constant 1.000000e+00 : f32
    %237 = vector.broadcast %cst_182 : f32 to vector<8x16xf32>
    %238 = arith.divf %237, %236 : vector<8x16xf32>
    %239 = arith.mulf %219, %238 : vector<8x16xf32>
    %cst_183 = arith.constant dense<0.000000e+00> : vector<8x16xf32>
    %240 = tpu.matmul %239, %229, %cst_183 {dimension_numbers = #tpu.dot_dimension_numbers<[1], [1], [0], [0], [0, 0, 1, 0], [], []>} : vector<8x16xf32>, vector<16x16xf32>, vector<8x16xf32> -> vector<8x16xf32>
    %c0_184 = arith.constant 0 : index
    %c8_185 = arith.constant 8 : index
    %c0_186 = arith.constant 0 : index
    %241 = vector.load %arg13[%c0_184, %c8_185, %c0_186] : memref<2x16x16xf32, #tpu.memory_space<vmem>>, vector<1x8x16xf32>
    %242 = vector.shape_cast %241 : vector<1x8x16xf32> to vector<8x16xf32>
    %243 = vector.shape_cast %240 : vector<8x16xf32> to vector<1x8x16xf32>
    tpu.vector_store %arg13[%c0_184, %c8_185, %c0_186], %243 {strides = array<i32>} : memref<2x16x16xf32, #tpu.memory_space<vmem>>, vector<1x8x16xf32>,
    %c1_187 = arith.constant 1 : index
    %c8_188 = arith.constant 8 : index
    %c0_189 = arith.constant 0 : index
    %244 = vector.load %arg10[%c1_187, %c8_188, %c0_189] : memref<2x16x16xf32, #tpu.memory_space<vmem>>, vector<1x8x16xf32>
    %245 = vector.shape_cast %244 : vector<1x8x16xf32> to vector<8x16xf32>
    %c1_190 = arith.constant 1 : index
    %c8_191 = arith.constant 8 : index
    %c0_192 = arith.constant 0 : index
    %246 = vector.load %arg11[%c1_190, %c8_191, %c0_192] : memref<2x16x16xf32, #tpu.memory_space<vmem>>, vector<1x8x16xf32>
    %247 = vector.shape_cast %246 : vector<1x8x16xf32> to vector<8x16xf32>
    %c1_193 = arith.constant 1 : index
    %c8_194 = arith.constant 8 : index
    %c0_195 = arith.constant 0 : index
    %248 = vector.load %arg12[%c1_193, %c8_194, %c0_195] : memref<2x16x16xf32, #tpu.memory_space<vmem>>, vector<1x8x16xf32>
    %249 = vector.shape_cast %248 : vector<1x8x16xf32> to vector<8x16xf32>
    %cst_196 = arith.constant dense<0.000000e+00> : vector<16x16xf32>
    %250 = tpu.matmul %245, %247, %cst_196 {dimension_numbers = #tpu.dot_dimension_numbers<[0], [0], [1], [1], [0, 1, 1, 1], [], []>} : vector<8x16xf32>, vector<8x16xf32>, vector<16x16xf32> -> vector<16x16xf32>
    %cst_197 = arith.constant dense<0xFF800000> : vector<16xf32>
    %251 = vector.multi_reduction <maximumf>, %250, %cst_197 [1] : vector<16x16xf32> to vector<16xf32>
    %252 = vector.shape_cast %251 : vector<16xf32> to vector<16x1xf32>
    %253 = vector.broadcast %252 : vector<16x1xf32> to vector<16x16xf32>
    %254 = arith.subf %250, %253 : vector<16x16xf32>
    %255 = math.exp %254 : vector<16x16xf32>
    %cst_198 = arith.constant dense<0.000000e+00> : vector<16xf32>
    %256 = vector.multi_reduction <add>, %255, %cst_198 [1] : vector<16x16xf32> to vector<16xf32>
    %257 = vector.shape_cast %256 : vector<16xf32> to vector<16x1xf32>
    %258 = vector.broadcast %257 : vector<16x1xf32> to vector<16x16xf32>
    %259 = arith.divf %255, %258 : vector<16x16xf32>
    %c1_199 = arith.constant 1 : index
    %c0_200 = arith.constant 0 : index
    %c0_201 = arith.constant 0 : index
    %260 = vector.load %arg13[%c1_199, %c0_200, %c0_201] : memref<2x16x16xf32, #tpu.memory_space<vmem>>, vector<1x8x16xf32>
    %261 = vector.shape_cast %260 : vector<1x8x16xf32> to vector<8x16xf32>
    %cst_202 = arith.constant 0.000000e+00 : f32
    %262 = vector.broadcast %cst_202 : f32 to vector<8x16xf32>
    %263 = arith.subf %262, %261 : vector<8x16xf32>
    %264 = math.exp %263 : vector<8x16xf32>
    %cst_203 = arith.constant 1.000000e+00 : f32
    %265 = vector.broadcast %cst_203 : f32 to vector<8x16xf32>
    %266 = arith.addf %265, %264 : vector<8x16xf32>
    %cst_204 = arith.constant 1.000000e+00 : f32
    %267 = vector.broadcast %cst_204 : f32 to vector<8x16xf32>
    %268 = arith.divf %267, %266 : vector<8x16xf32>
    %269 = arith.mulf %249, %268 : vector<8x16xf32>
    %cst_205 = arith.constant dense<0.000000e+00> : vector<8x16xf32>
    %270 = tpu.matmul %269, %259, %cst_205 {dimension_numbers = #tpu.dot_dimension_numbers<[1], [1], [0], [0], [0, 0, 1, 0], [], []>} : vector<8x16xf32>, vector<16x16xf32>, vector<8x16xf32> -> vector<8x16xf32>
    %c1_206 = arith.constant 1 : index
    %c8_207 = arith.constant 8 : index
    %c0_208 = arith.constant 0 : index
    %271 = vector.load %arg13[%c1_206, %c8_207, %c0_208] : memref<2x16x16xf32, #tpu.memory_space<vmem>>, vector<1x8x16xf32>
    %272 = vector.shape_cast %271 : vector<1x8x16xf32> to vector<8x16xf32>
    %273 = vector.shape_cast %270 : vector<8x16xf32> to vector<1x8x16xf32>
    tpu.vector_store %arg13[%c1_206, %c8_207, %c0_208], %273 {strides = array<i32>} : memref<2x16x16xf32, #tpu.memory_space<vmem>>, vector<1x8x16xf32>,
    %c3 = arith.constant 3 : index
    %c0_209 = arith.constant 0 : index
    %c0_210 = arith.constant 0 : index
    %274 = vector.load %arg4[%c3, %c0_209, %c0_210] : memref<4x16x16xf32, #tpu.memory_space<vmem>>, vector<1x16x16xf32>
    %275 = vector.shape_cast %274 : vector<1x16x16xf32> to vector<16x16xf32>
    %c0_211 = arith.constant 0 : index
    %c0_212 = arith.constant 0 : index
    %c0_213 = arith.constant 0 : index
    %276 = vector.load %arg13[%c0_211, %c0_212, %c0_213] : memref<2x16x16xf32, #tpu.memory_space<vmem>>, vector<1x16x16xf32>
    %277 = vector.shape_cast %276 : vector<1x16x16xf32> to vector<16x16xf32>
    %cst_214 = arith.constant dense<0.000000e+00> : vector<16x16xf32>
    %278 = tpu.matmul %275, %277, %cst_214 {dimension_numbers = #tpu.dot_dimension_numbers<[1], [0], [0], [1], [0, 0, 1, 1], [], []>} : vector<16x16xf32>, vector<16x16xf32>, vector<16x16xf32> -> vector<16x16xf32>
    %c3_215 = arith.constant 3 : index
    %c0_216 = arith.constant 0 : index
    %c0_217 = arith.constant 0 : index
    %279 = vector.load %arg5[%c3_215, %c0_216, %c0_217] : memref<4x16x1xf32, #tpu.memory_space<vmem>>, vector<1x16x1xf32>
    %280 = vector.shape_cast %279 : vector<1x16x1xf32> to vector<16x1xf32>
    %281 = vector.broadcast %280 : vector<16x1xf32> to vector<16x16xf32>
    %282 = arith.addf %278, %281 : vector<16x16xf32>
    %c0_218 = arith.constant 0 : index
    %c0_219 = arith.constant 0 : index
    %c0_220 = arith.constant 0 : index
    %283 = vector.load %arg9[%c0_218, %c0_219, %c0_220] : memref<2x16x16xf32, #tpu.memory_space<vmem>>, vector<1x16x16xf32>
    %284 = vector.shape_cast %283 : vector<1x16x16xf32> to vector<16x16xf32>
    %285 = vector.shape_cast %282 : vector<16x16xf32> to vector<1x16x16xf32>
    tpu.vector_store %arg9[%c0_218, %c0_219, %c0_220], %285 {strides = array<i32>} : memref<2x16x16xf32, #tpu.memory_space<vmem>>, vector<1x16x16xf32>,
    %c3_221 = arith.constant 3 : index
    %c0_222 = arith.constant 0 : index
    %c0_223 = arith.constant 0 : index
    %286 = vector.load %arg4[%c3_221, %c0_222, %c0_223] : memref<4x16x16xf32, #tpu.memory_space<vmem>>, vector<1x16x16xf32>
    %287 = vector.shape_cast %286 : vector<1x16x16xf32> to vector<16x16xf32>
    %c1_224 = arith.constant 1 : index
    %c0_225 = arith.constant 0 : index
    %c0_226 = arith.constant 0 : index
    %288 = vector.load %arg13[%c1_224, %c0_225, %c0_226] : memref<2x16x16xf32, #tpu.memory_space<vmem>>, vector<1x16x16xf32>
    %289 = vector.shape_cast %288 : vector<1x16x16xf32> to vector<16x16xf32>
    %cst_227 = arith.constant dense<0.000000e+00> : vector<16x16xf32>
    %290 = tpu.matmul %287, %289, %cst_227 {dimension_numbers = #tpu.dot_dimension_numbers<[1], [0], [0], [1], [0, 0, 1, 1], [], []>} : vector<16x16xf32>, vector<16x16xf32>, vector<16x16xf32> -> vector<16x16xf32>
    %c3_228 = arith.constant 3 : index
    %c0_229 = arith.constant 0 : index
    %c0_230 = arith.constant 0 : index
    %291 = vector.load %arg5[%c3_228, %c0_229, %c0_230] : memref<4x16x1xf32, #tpu.memory_space<vmem>>, vector<1x16x1xf32>
    %292 = vector.shape_cast %291 : vector<1x16x1xf32> to vector<16x1xf32>
    %293 = vector.broadcast %292 : vector<16x1xf32> to vector<16x16xf32>
    %294 = arith.addf %290, %293 : vector<16x16xf32>
    %c1_231 = arith.constant 1 : index
    %c0_232 = arith.constant 0 : index
    %c0_233 = arith.constant 0 : index
    %295 = vector.load %arg9[%c1_231, %c0_232, %c0_233] : memref<2x16x16xf32, #tpu.memory_space<vmem>>, vector<1x16x16xf32>
    %296 = vector.shape_cast %295 : vector<1x16x16xf32> to vector<16x16xf32>
    %297 = vector.shape_cast %294 : vector<16x16xf32> to vector<1x16x16xf32>
    tpu.vector_store %arg9[%c1_231, %c0_232, %c0_233], %297 {strides = array<i32>} : memref<2x16x16xf32, #tpu.memory_space<vmem>>, vector<1x16x16xf32>,
    %c0_234 = arith.constant 0 : index
    %c0_235 = arith.constant 0 : index
    %c0_236 = arith.constant 0 : index
    %298 = vector.load %arg9[%c0_234, %c0_235, %c0_236] : memref<2x16x16xf32, #tpu.memory_space<vmem>>, vector<2x16x16xf32>
    %cst_237 = arith.constant dense<0.000000e+00> : vector<16x16xf32>
    %299 = vector.multi_reduction <add>, %298, %cst_237 [0] : vector<2x16x16xf32> to vector<16x16xf32>
    %300 = vector.shape_cast %299 : vector<16x16xf32> to vector<1x16x16xf32>
    %cst_238 = arith.constant dense<0.000000e+00> : vector<1x16xf32>
    %301 = vector.multi_reduction <add>, %300, %cst_238 [2] : vector<1x16x16xf32> to vector<1x16xf32>
    %302 = vector.shape_cast %301 : vector<1x16xf32> to vector<1x16x1xf32>
    %cst_239 = arith.constant 3.200000e+01 : f32
    %303 = vector.broadcast %cst_239 : f32 to vector<1x16x1xf32>
    %304 = arith.divf %302, %303 : vector<1x16x1xf32>
    %305 = vector.broadcast %304 : vector<1x16x1xf32> to vector<2x16x16xf32>
    %306 = arith.subf %298, %305 : vector<2x16x16xf32>
    %307 = arith.mulf %306, %306 : vector<2x16x16xf32>
    %cst_240 = arith.constant dense<0.000000e+00> : vector<16x16xf32>
    %308 = vector.multi_reduction <add>, %307, %cst_240 [0] : vector<2x16x16xf32> to vector<16x16xf32>
    %309 = vector.shape_cast %308 : vector<16x16xf32> to vector<1x16x16xf32>
    %cst_241 = arith.constant dense<0.000000e+00> : vector<1x16xf32>
    %310 = vector.multi_reduction <add>, %309, %cst_241 [2] : vector<1x16x16xf32> to vector<1x16xf32>
    %311 = vector.shape_cast %310 : vector<1x16xf32> to vector<1x16x1xf32>
    %cst_242 = arith.constant 3.200000e+01 : f32
    %312 = vector.broadcast %cst_242 : f32 to vector<1x16x1xf32>
    %313 = arith.divf %311, %312 : vector<1x16x1xf32>
    %cst_243 = arith.constant 9.99999974E-6 : f32
    %314 = vector.broadcast %cst_243 : f32 to vector<1x16x1xf32>
    %315 = arith.addf %313, %314 : vector<1x16x1xf32>
    %316 = math.rsqrt %315 : vector<1x16x1xf32>
    %317 = vector.broadcast %316 : vector<1x16x1xf32> to vector<2x16x16xf32>
    %318 = arith.mulf %306, %317 : vector<2x16x16xf32>
    %c3_244 = arith.constant 3 : index
    %c0_245 = arith.constant 0 : index
    %c0_246 = arith.constant 0 : index
    %319 = vector.load %arg6[%c3_244, %c0_245, %c0_246] : memref<4x16x1xf32, #tpu.memory_space<vmem>>, vector<1x16x1xf32>
    %320 = vector.shape_cast %319 : vector<1x16x1xf32> to vector<16x1xf32>
    %321 = vector.shape_cast %320 : vector<16x1xf32> to vector<1x16x1xf32>
    %322 = vector.broadcast %321 : vector<1x16x1xf32> to vector<2x16x16xf32>
    %323 = arith.mulf %318, %322 : vector<2x16x16xf32>
    %c3_247 = arith.constant 3 : index
    %c0_248 = arith.constant 0 : index
    %c0_249 = arith.constant 0 : index
    %324 = vector.load %arg7[%c3_247, %c0_248, %c0_249] : memref<4x16x1xf32, #tpu.memory_space<vmem>>, vector<1x16x1xf32>
    %325 = vector.shape_cast %324 : vector<1x16x1xf32> to vector<16x1xf32>
    %326 = vector.shape_cast %325 : vector<16x1xf32> to vector<1x16x1xf32>
    %327 = vector.broadcast %326 : vector<1x16x1xf32> to vector<2x16x16xf32>
    %328 = arith.addf %323, %327 : vector<2x16x16xf32>
    %cst_250 = arith.constant 0.000000e+00 : f32
    %329 = vector.broadcast %cst_250 : f32 to vector<2x16x16xf32>
    %330 = arith.maximumf %328, %329 : vector<2x16x16xf32>
    %c0_251 = arith.constant 0 : index
    %c0_252 = arith.constant 0 : index
    %c0_253 = arith.constant 0 : index
    %331 = vector.load %arg9[%c0_251, %c0_252, %c0_253] : memref<2x16x16xf32, #tpu.memory_space<vmem>>, vector<2x16x16xf32>
    tpu.vector_store %arg9[%c0_251, %c0_252, %c0_253], %330 {strides = array<i32>} : memref<2x16x16xf32, #tpu.memory_space<vmem>>, vector<2x16x16xf32>,
    %c0_254 = arith.constant 0 : index
    %c0_255 = arith.constant 0 : index
    %c0_256 = arith.constant 0 : index
    %332 = vector.load %arg3[%c0_254, %c0_255, %c0_256] : memref<2x16x16xf32, #tpu.memory_space<vmem>>, vector<2x16x16xf32>
    %c0_257 = arith.constant 0 : index
    %333 = memref.load %arg8[%c0_257] : memref<1xf32, #tpu.memory_space<smem>>
    %c0_258 = arith.constant 0 : index
    %c0_259 = arith.constant 0 : index
    %c0_260 = arith.constant 0 : index
    %334 = vector.load %arg9[%c0_258, %c0_259, %c0_260] : memref<2x16x16xf32, #tpu.memory_space<vmem>>, vector<2x16x16xf32>
    %335 = vector.broadcast %333 : f32 to vector<2x16x16xf32>
    %336 = arith.mulf %335, %334 : vector<2x16x16xf32>
    %337 = arith.addf %332, %336 : vector<2x16x16xf32>
    %c0_261 = arith.constant 0 : index
    %c0_262 = arith.constant 0 : index
    %c0_263 = arith.constant 0 : index
    %338 = vector.load %arg9[%c0_261, %c0_262, %c0_263] : memref<2x16x16xf32, #tpu.memory_space<vmem>>, vector<2x16x16xf32>
    tpu.vector_store %arg9[%c0_261, %c0_262, %c0_263], %337 {strides = array<i32>} : memref<2x16x16xf32, #tpu.memory_space<vmem>>, vector<2x16x16xf32>,
    return
  }
  func.func @transform_0(%arg0: i32) -> (i32, i32, i32) {
    %c0_i32 = arith.constant 0 : i32
    %c0_i32_0 = arith.constant 0 : i32
    %c0_i32_1 = arith.constant 0 : i32
    %c0_i32_2 = arith.constant 0 : i32
    return %c0_i32, %c0_i32_0, %c0_i32_1 : i32, i32, i32
  }
  func.func @transform_1(%arg0: i32) -> (i32, i32, i32) {
    %c0_i32 = arith.constant 0 : i32
    %c0_i32_0 = arith.constant 0 : i32
    %c0_i32_1 = arith.constant 0 : i32
    %c0_i32_2 = arith.constant 0 : i32
    return %c0_i32, %c0_i32_0, %c0_i32_1 : i32, i32, i32
  }
  func.func @transform_2(%arg0: i32) -> (i32, i32, i32) {
    %c0_i32 = arith.constant 0 : i32
    %c0_i32_0 = arith.constant 0 : i32
    %c0_i32_1 = arith.constant 0 : i32
    %c0_i32_2 = arith.constant 0 : i32
    return %c0_i32, %c0_i32_0, %c0_i32_1 : i32, i32, i32
  }
  func.func @transform_3(%arg0: i32) -> (i32, i32, i32) {
    %c0_i32 = arith.constant 0 : i32
    %c0_i32_0 = arith.constant 0 : i32
    %c0_i32_1 = arith.constant 0 : i32
    %c0_i32_2 = arith.constant 0 : i32
    return %c0_i32, %c0_i32_0, %c0_i32_1 : i32, i32, i32
  }
  func.func @transform_4(%arg0: i32) -> (i32, i32, i32) {
    %c0_i32 = arith.constant 0 : i32
    %c0_i32_0 = arith.constant 0 : i32
    %c0_i32_1 = arith.constant 0 : i32
    %c0_i32_2 = arith.constant 0 : i32
    return %c0_i32, %c0_i32_0, %c0_i32_1 : i32, i32, i32
  }
  func.func @transform_5(%arg0: i32) -> (i32, i32, i32) {
    %c0_i32 = arith.constant 0 : i32
    %c0_i32_0 = arith.constant 0 : i32
    %c0_i32_1 = arith.constant 0 : i32
    %c0_i32_2 = arith.constant 0 : i32
    return %c0_i32, %c0_i32_0, %c0_i32_1 : i32, i32, i32
  }
  func.func @transform_6(%arg0: i32) -> (i32, i32, i32) {
    %c0_i32 = arith.constant 0 : i32
    %c0_i32_0 = arith.constant 0 : i32
    %c0_i32_1 = arith.constant 0 : i32
    %c0_i32_2 = arith.constant 0 : i32
    return %c0_i32, %c0_i32_0, %c0_i32_1 : i32, i32, i32
  }
  func.func @transform_7(%arg0: i32) -> i32 {
    %c0_i32 = arith.constant 0 : i32
    %c0_i32_0 = arith.constant 0 : i32
    return %c0_i32 : i32
  }
  func.func @transform_8(%arg0: i32) -> (i32, i32, i32) {
    %c0_i32 = arith.constant 0 : i32
    %c0_i32_0 = arith.constant 0 : i32
    %c0_i32_1 = arith.constant 0 : i32
    %c0_i32_2 = arith.constant 0 : i32
    return %c0_i32, %c0_i32_0, %c0_i32_1 : i32, i32, i32
  }
}

</mosaic_0001>

<llo_original>
// kernel: mh_attention_forward.1
$region0: #{mh_attention_forward.1}
  #allocation0 [shape = 'u32[]', space=smem, size = 0x4, offset = 0x4, fixed_abs, tag = 'smem constant byte address 0x4 - core index']
  #allocation1 [shape = 'u32[72,128]{1,0:T(1,128)}', space=vmem, size = 0x9000, scoped, tag = 'internal scratch']
  #allocation2 [shape = 'f32[2,16,16]{2,1,0:T(8,128)}', space=vmem, size = 0x4000, scoped, tag = 'scratch operand']
  #allocation3 [shape = 'f32[2,16,16]{2,1,0:T(8,128)}', space=vmem, size = 0x4000, scoped, tag = 'scratch operand']
  #allocation4 [shape = 'f32[2,16,16]{2,1,0:T(8,128)}', space=vmem, size = 0x4000, scoped, tag = 'scratch operand']
  #allocation5 [shape = 'f32[2,16,16]{2,1,0:T(8,128)}', space=vmem, size = 0x4000, scoped, tag = 'scratch operand']
  #allocation6 [shape = 'f32[1]{0:T(128)S(6)}', space=smem, size = 0x200, scoped, tag = 'scoped memory for mh_attention_forward.1']
  %s0 = inlined_call_operand.vmem [shape: f32[2,16,16], index: 0, kind: input, shape index: {}]
  %s1 = inlined_call_operand.vmem [shape: f32[2,16,16], index: 1, kind: input, shape index: {}]
  %s2 = inlined_call_operand.vmem [shape: f32[2,16,16], index: 2, kind: input, shape index: {}]
  %s3 = inlined_call_operand.vmem [shape: f32[4,16,16], index: 3, kind: input, shape index: {}]
  %s4 = inlined_call_operand.vmem [shape: f32[4,16,1], index: 4, kind: input, shape index: {}]
  %s5 = inlined_call_operand.vmem [shape: f32[4,16,1], index: 5, kind: input, shape index: {}]
  %s6 = inlined_call_operand.vmem [shape: f32[4,16,1], index: 6, kind: input, shape index: {}]
  %s7 = inlined_call_operand.<no memory space> [shape: f32[1], index: 7, kind: input, shape index: {}]
  %s8 = inlined_call_operand.hbm [shape: f32[2,16,16], index: 8, kind: output, shape index: {}]
  %s9 = sld [smem:[#allocation0]]
  $region42: #{mh_attention_forward.1} parent=0
    _
  %s11 = ssub.s32 1, %s9
  %s12 = scalar_select 0, %s11, %s9
  %13 = sst [smem:[#allocation6]] %s7
  $region1: #{mh_attention_forward.1} parent=0
    #allocation7 [shape = 'u8[16384]{0}', space=vmem, size = 0x4000, scoped, tag = 'output window, operand 0, single buffered']
    #allocation8 [shape = 's32[1]{0}', space=sflag, size = 0x4, scoped, tag = 'scoped memory for mh_attention_forward.1']
    %14 = vsyncpa [#allocation8], 0
    // Predicated region
    $region2: #{mh_attention_forward.1} parent=1 // pred_check
      _
    $region3: #{mh_attention_forward.1} parent=1 // pred_check_branch
      %16 = sbr.rel (0) target = $region5
    $region4: #{mh_attention_forward.1} parent=1 // pred_region
      _
    $region5: #{mh_attention_forward.1} parent=1 // pred_fallthru
      _
    // Predicated region
    $region6: #{mh_attention_forward.1} parent=1 // pred_check
      _
    $region7: #{mh_attention_forward.1} parent=1 // pred_check_branch
      %18 = sbr.rel (0) target = $region9
    $region8: #{mh_attention_forward.1} parent=1 // pred_region
      _
    $region9: #{mh_attention_forward.1} parent=1 // pred_fallthru
      _
    // Predicated region
    $region10: #{mh_attention_forward.1} parent=1 // pred_check
      _
    $region11: #{mh_attention_forward.1} parent=1 // pred_check_branch
      %20 = sbr.rel (0) target = $region13
    $region12: #{mh_attention_forward.1} parent=1 // pred_region
      _
    $region13: #{mh_attention_forward.1} parent=1 // pred_fallthru
      _
    // Predicated region
    $region14: #{mh_attention_forward.1} parent=1 // pred_check
      _
    $region15: #{mh_attention_forward.1} parent=1 // pred_check_branch
      %22 = sbr.rel (0) target = $region17
    $region16: #{mh_attention_forward.1} parent=1 // pred_region
      _
    $region17: #{mh_attention_forward.1} parent=1 // pred_fallthru
      _
    // Predicated region
    $region18: #{mh_attention_forward.1} parent=1 // pred_check
      _
    $region19: #{mh_attention_forward.1} parent=1 // pred_check_branch
      %24 = sbr.rel (0) target = $region21
    $region20: #{mh_attention_forward.1} parent=1 // pred_region
      _
    $region21: #{mh_attention_forward.1} parent=1 // pred_fallthru
      _
    // Predicated region
    $region22: #{mh_attention_forward.1} parent=1 // pred_check
      _
    $region23: #{mh_attention_forward.1} parent=1 // pred_check_branch
      %26 = sbr.rel (0) target = $region25
    $region24: #{mh_attention_forward.1} parent=1 // pred_region
      _
    $region25: #{mh_attention_forward.1} parent=1 // pred_fallthru
      _
    // Predicated region
    $region26: #{mh_attention_forward.1} parent=1 // pred_check
      _
    $region27: #{mh_attention_forward.1} parent=1 // pred_check_branch
      %28 = sbr.rel (0) target = $region29
    $region28: #{mh_attention_forward.1} parent=1 // pred_region
      _
    $region29: #{mh_attention_forward.1} parent=1 // pred_fallthru
      _
    // Predicated region
    $region30: #{mh_attention_forward.1} parent=1 // pred_check
      _
    $region31: #{mh_attention_forward.1} parent=1 // pred_check_branch
      %30 = sbr.rel (0) target = $region33
    $region32: #{mh_attention_forward.1} parent=1 // pred_region
      _
    $region33: #{mh_attention_forward.1} parent=1 // pred_fallthru
      _
    %v31 = vld [vmem:[%s3] sm:$0xff]
    %v32 = vld [vmem:[%s3 + $0x8] sm:$0xff]
    %v33 = vld [vmem:[%s0] sm:$0xff]
    %v34 = vld [vmem:[%s0 + $0x8] sm:$0xff]
    %v35 = vld [vmem:[%s4] sm:$0xff]
    %v36 = vld [vmem:[%s4 + $0x8] sm:$0xff]
    %38 = vset.pattern.permute.xlu0 0
    %39 = vperm.xlu0 %38, %v35
    %v40 = vpop.permute.xlu0 %39
    %43 = vset.pattern.permute.xlu0 0
    %44 = vperm.xlu0 %43, %v36
    %v45 = vpop.permute.xlu0 %44
    %vm47 = vcmask 130048
    %v49 = vsel %vm47, %v31, 0
    %v52 = vsel %vm47, %v32, 0
    %54 = vmatpush.msra.mxu0 0.0
    %55 = vmatpush.msra.mxu0 0.0
    %56 = vmatpush.msra.mxu0 0.0
    %57 = vmatpush.msra.mxu0 0.0
    %58 = vmatpush.msra.mxu0 0.0
    %59 = vmatpush.msra.mxu0 0.0
    %60 = vmatpush.msra.mxu0 0.0
    %61 = vmatpush.msra.mxu0 0.0
    %62 = vmatpush.msra.mxu0 0.0
    %63 = vmatpush.msra.mxu0 0.0
    %64 = vmatpush.msra.mxu0 0.0
    %65 = vmatpush.msra.mxu0 0.0
    %66 = vmatpush.msra.mxu0 0.0
    %67 = vmatpush.msra.mxu0 0.0
    %68 = vmatpush.msra.mxu0 %v34
    %69 = vmatpush.msra.mxu0 %v33
    %70 = vmatmul.f32.gmra.mxu0 %v49
    %v71 = vpop.f32.mrf.mxu0
    %v72 = vadd.f32 %v40, %v71
    %73 = vmatmul.f32.gmra.mxu0 %v52
    %v74 = vpop.f32.mrf.mxu0
    %v75 = vadd.f32 %v45, %v74
    %76 = vdwg.mxu0
    %77 = vst.msk [vmem:[#allocation2] sm:$0xff] %vm47, %v72
    %78 = vst.msk [vmem:[#allocation2 + $0x8] sm:$0xff] %vm47, %v75
    %v79 = vld [vmem:[%s3] sm:$0xff]
    %v80 = vld [vmem:[%s3 + $0x8] sm:$0xff]
    %s81 = scalar_lea.vmem %s0, 16
    %v82 = vld [vmem:[%s81] sm:$0xff]
    %v83 = vld [vmem:[%s81 + $0x8] sm:$0xff]
    %v84 = vld [vmem:[%s4] sm:$0xff]
    %v85 = vld [vmem:[%s4 + $0x8] sm:$0xff]
    %87 = vset.pattern.permute.xlu0 0
    %88 = vperm.xlu0 %87, %v84
    %v89 = vpop.permute.xlu0 %88
    %92 = vset.pattern.permute.xlu0 0
    %93 = vperm.xlu0 %92, %v85
    %v94 = vpop.permute.xlu0 %93
    %v97 = vsel %vm47, %v79, 0
    %v100 = vsel %vm47, %v80, 0
    %102 = vmatpush.msra.mxu0 0.0
    %103 = vmatpush.msra.mxu0 0.0
    %104 = vmatpush.msra.mxu0 0.0
    %105 = vmatpush.msra.mxu0 0.0
    %106 = vmatpush.msra.mxu0 0.0
    %107 = vmatpush.msra.mxu0 0.0
    %108 = vmatpush.msra.mxu0 0.0
    %109 = vmatpush.msra.mxu0 0.0
    %110 = vmatpush.msra.mxu0 0.0
    %111 = vmatpush.msra.mxu0 0.0
    %112 = vmatpush.msra.mxu0 0.0
    %113 = vmatpush.msra.mxu0 0.0
    %114 = vmatpush.msra.mxu0 0.0
    %115 = vmatpush.msra.mxu0 0.0
    %116 = vmatpush.msra.mxu0 %v83
    %117 = vmatpush.msra.mxu0 %v82
    %118 = vmatmul.f32.gmra.mxu0 %v97
    %v119 = vpop.f32.mrf.mxu0
    %v120 = vadd.f32 %v89, %v119
    %121 = vmatmul.f32.gmra.mxu0 %v100
    %v122 = vpop.f32.mrf.mxu0
    %v123 = vadd.f32 %v94, %v122
    %124 = vdwg.mxu0
    %s125 = scalar_lea.vmem [#allocation2], 16
    %126 = vst.msk [vmem:[%s125] sm:$0xff] %vm47, %v120
    %127 = vst.msk [vmem:[%s125 + $0x8] sm:$0xff] %vm47, %v123
    %v128 = vld [vmem:[#allocation2] sm:$0xff]
    %v129 = vld [vmem:[#allocation2 + $0x8] sm:$0xff]
    %v130 = vld [vmem:[#allocation2 + $0x10] sm:$0xff]
    %v131 = vld [vmem:[#allocation2 + $0x18] sm:$0xff]
    %v132 = vsel %vm47, %v128, 0.0
    %v133 = vsel %vm47, %v130, 0.0
    %v134 = vadd.f32 %v132, %v133
    %v135 = vsel %vm47, %v129, 0.0
    %v136 = vsel %vm47, %v131, 0.0
    %v137 = vadd.f32 %v135, %v136
    %v138 = vsel %vm47, %v134, 0.0
    %139 = vadd.xlane.f32.xlu0 %v138
    %v140 = vpop.xlane.xlu0 %139
    %v141 = vsel %vm47, %v137, 0.0
    %142 = vadd.xlane.f32.xlu0 %v141
    %v143 = vpop.xlane.xlu0 %142
    %v144 = vrcp.pop 32.0
    %v145 = vmul.f32 32.0, %v144
    %v146 = vsub.f32 1.0, %v145
    %v147 = vmul.f32 %v144, %v146
    %v148 = vadd.f32 %v144, %v147
    %vm149 = vweird.f32 %v144
    %v150 = vsel %vm149, %v144, %v148
    %v151 = vmul.f32 %v140, %v150
    %v152 = vmul.f32 %v143, %v150
    %v153 = vsub.f32 %v128, %v151
    %v154 = vsub.f32 %v129, %v152
    %v155 = vsub.f32 %v130, %v151
    %v156 = vsub.f32 %v131, %v152
    %v157 = vmul.f32 %v153, %v153
    %v158 = vmul.f32 %v154, %v154
    %v159 = vmul.f32 %v155, %v155
    %v160 = vmul.f32 %v156, %v156
    %v161 = vsel %vm47, %v157, 0.0
    %v162 = vsel %vm47, %v159, 0.0
    %v163 = vadd.f32 %v161, %v162
    %v164 = vsel %vm47, %v158, 0.0
    %v165 = vsel %vm47, %v160, 0.0
    %v166 = vadd.f32 %v164, %v165
    %v167 = vsel %vm47, %v163, 0.0
    %168 = vadd.xlane.f32.xlu0 %v167
    %v169 = vpop.xlane.xlu0 %168
    %v170 = vsel %vm47, %v166, 0.0
    %171 = vadd.xlane.f32.xlu0 %v170
    %v172 = vpop.xlane.xlu0 %171
    %v173 = vmul.f32 %v169, %v150
    %v174 = vmul.f32 %v172, %v150
    %v175 = vadd.f32 %v173, 1e-05
    %v176 = vadd.f32 %v174, 1e-05
    %v177 = vrsqrt.pop %v175
    %v178 = vmul.f32 %v177, %v175
    %v179 = vmul.f32 %v178, %v177
    %v180 = vmul.f32 0.5, %v179
    %v181 = vsub.f32 1.5, %v180
    %v182 = vmul.f32 %v177, %v181
    %vm183 = vweird.f32 %v175
    %vm184 = vweird.f32 %v177
    %vm185 = vmor %vm183, %vm184
    %v186 = vsel %vm185, %v177, %v182
    %v187 = vrsqrt.pop %v176
    %v188 = vmul.f32 %v187, %v176
    %v189 = vmul.f32 %v188, %v187
    %v190 = vmul.f32 0.5, %v189
    %v191 = vsub.f32 1.5, %v190
    %v192 = vmul.f32 %v187, %v191
    %vm193 = vweird.f32 %v176
    %vm194 = vweird.f32 %v187
    %vm195 = vmor %vm193, %vm194
    %v196 = vsel %vm195, %v187, %v192
    %v197 = vmul.f32 %v153, %v186
    %v198 = vmul.f32 %v154, %v196
    %v199 = vmul.f32 %v155, %v186
    %v200 = vmul.f32 %v156, %v196
    %v201 = vld [vmem:[%s5] sm:$0xff]
    %v202 = vld [vmem:[%s5 + $0x8] sm:$0xff]
    %204 = vset.pattern.permute.xlu0 0
    %205 = vperm.xlu0 %204, %v201
    %v206 = vpop.permute.xlu0 %205
    %209 = vset.pattern.permute.xlu0 0
    %210 = vperm.xlu0 %209, %v202
    %v211 = vpop.permute.xlu0 %210
    %v213 = vmul.f32 %v197, %v206
    %v214 = vmul.f32 %v198, %v211
    %v215 = vmul.f32 %v199, %v206
    %v216 = vmul.f32 %v200, %v211
    %v217 = vld [vmem:[%s6] sm:$0xff]
    %v218 = vld [vmem:[%s6 + $0x8] sm:$0xff]
    %220 = vset.pattern.permute.xlu0 0
    %221 = vperm.xlu0 %220, %v217
    %v222 = vpop.permute.xlu0 %221
    %225 = vset.pattern.permute.xlu0 0
    %226 = vperm.xlu0 %225, %v218
    %v227 = vpop.permute.xlu0 %226
    %v229 = vadd.f32 %v213, %v222
    %v230 = vadd.f32 %v214, %v227
    %v231 = vadd.f32 %v215, %v222
    %v232 = vadd.f32 %v216, %v227
    %v233 = vmax.f32 %v229, 0.0
    %v234 = vmax.f32 %v230, 0.0
    %v235 = vmax.f32 %v231, 0.0
    %v236 = vmax.f32 %v232, 0.0
    %237 = vst.msk [vmem:[#allocation2] sm:$0xff] %vm47, %v233
    %238 = vst.msk [vmem:[#allocation2 + $0x8] sm:$0xff] %vm47, %v234
    %239 = vst.msk [vmem:[#allocation2 + $0x10] sm:$0xff] %vm47, %v235
    %240 = vst.msk [vmem:[#allocation2 + $0x18] sm:$0xff] %vm47, %v236
    %s241 = scalar_lea.vmem %s3, 16
    %v242 = vld [vmem:[%s241] sm:$0xff]
    %v243 = vld [vmem:[%s241 + $0x8] sm:$0xff]
    %v244 = vld [vmem:[%s1] sm:$0xff]
    %v245 = vld [vmem:[%s1 + $0x8] sm:$0xff]
    %s246 = scalar_lea.vmem %s4, 16
    %v247 = vld [vmem:[%s246] sm:$0xff]
    %v248 = vld [vmem:[%s246 + $0x8] sm:$0xff]
    %250 = vset.pattern.permute.xlu0 0
    %251 = vperm.xlu0 %250, %v247
    %v252 = vpop.permute.xlu0 %251
    %255 = vset.pattern.permute.xlu0 0
    %256 = vperm.xlu0 %255, %v248
    %v257 = vpop.permute.xlu0 %256
    %v260 = vsel %vm47, %v242, 0
    %v263 = vsel %vm47, %v243, 0
    %265 = vmatpush.msra.mxu0 0.0
    %266 = vmatpush.msra.mxu0 0.0
    %267 = vmatpush.msra.mxu0 0.0
    %268 = vmatpush.msra.mxu0 0.0
    %269 = vmatpush.msra.mxu0 0.0
    %270 = vmatpush.msra.mxu0 0.0
    %271 = vmatpush.msra.mxu0 0.0
    %272 = vmatpush.msra.mxu0 0.0
    %273 = vmatpush.msra.mxu0 0.0
    %274 = vmatpush.msra.mxu0 0.0
    %275 = vmatpush.msra.mxu0 0.0
    %276 = vmatpush.msra.mxu0 0.0
    %277 = vmatpush.msra.mxu0 0.0
    %278 = vmatpush.msra.mxu0 0.0
    %279 = vmatpush.msra.mxu0 %v245
    %280 = vmatpush.msra.mxu0 %v244
    %281 = vmatmul.f32.gmra.mxu0 %v260
    %v282 = vpop.f32.mrf.mxu0
    %v283 = vadd.f32 %v252, %v282
    %284 = vmatmul.f32.gmra.mxu0 %v263
    %v285 = vpop.f32.mrf.mxu0
    %v286 = vadd.f32 %v257, %v285
    %287 = vdwg.mxu0
    %288 = vst.msk [vmem:[#allocation3] sm:$0xff] %vm47, %v283
    %289 = vst.msk [vmem:[#allocation3 + $0x8] sm:$0xff] %vm47, %v286
    %v290 = vld [vmem:[%s241] sm:$0xff]
    %v291 = vld [vmem:[%s241 + $0x8] sm:$0xff]
    %s292 = scalar_lea.vmem %s1, 16
    %v293 = vld [vmem:[%s292] sm:$0xff]
    %v294 = vld [vmem:[%s292 + $0x8] sm:$0xff]
    %v295 = vld [vmem:[%s246] sm:$0xff]
    %v296 = vld [vmem:[%s246 + $0x8] sm:$0xff]
    %298 = vset.pattern.permute.xlu0 0
    %299 = vperm.xlu0 %298, %v295
    %v300 = vpop.permute.xlu0 %299
    %303 = vset.pattern.permute.xlu0 0
    %304 = vperm.xlu0 %303, %v296
    %v305 = vpop.permute.xlu0 %304
    %v308 = vsel %vm47, %v290, 0
    %v311 = vsel %vm47, %v291, 0
    %313 = vmatpush.msra.mxu0 0.0
    %314 = vmatpush.msra.mxu0 0.0
    %315 = vmatpush.msra.mxu0 0.0
    %316 = vmatpush.msra.mxu0 0.0
    %317 = vmatpush.msra.mxu0 0.0
    %318 = vmatpush.msra.mxu0 0.0
    %319 = vmatpush.msra.mxu0 0.0
    %320 = vmatpush.msra.mxu0 0.0
    %321 = vmatpush.msra.mxu0 0.0
    %322 = vmatpush.msra.mxu0 0.0
    %323 = vmatpush.msra.mxu0 0.0
    %324 = vmatpush.msra.mxu0 0.0
    %325 = vmatpush.msra.mxu0 0.0
    %326 = vmatpush.msra.mxu0 0.0
    %327 = vmatpush.msra.mxu0 %v294
    %328 = vmatpush.msra.mxu0 %v293
    %329 = vmatmul.f32.gmra.mxu0 %v308
    %v330 = vpop.f32.mrf.mxu0
    %v331 = vadd.f32 %v300, %v330
    %332 = vmatmul.f32.gmra.mxu0 %v311
    %v333 = vpop.f32.mrf.mxu0
    %v334 = vadd.f32 %v305, %v333
    %335 = vdwg.mxu0
    %s336 = scalar_lea.vmem [#allocation3], 16
    %337 = vst.msk [vmem:[%s336] sm:$0xff] %vm47, %v331
    %338 = vst.msk [vmem:[%s336 + $0x8] sm:$0xff] %vm47, %v334
    %v339 = vld [vmem:[#allocation3] sm:$0xff]
    %v340 = vld [vmem:[#allocation3 + $0x8] sm:$0xff]
    %v341 = vld [vmem:[#allocation3 + $0x10] sm:$0xff]
    %v342 = vld [vmem:[#allocation3 + $0x18] sm:$0xff]
    %v343 = vsel %vm47, %v339, 0.0
    %v344 = vsel %vm47, %v341, 0.0
    %v345 = vadd.f32 %v343, %v344
    %v346 = vsel %vm47, %v340, 0.0
    %v347 = vsel %vm47, %v342, 0.0
    %v348 = vadd.f32 %v346, %v347
    %v349 = vsel %vm47, %v345, 0.0
    %350 = vadd.xlane.f32.xlu0 %v349
    %v351 = vpop.xlane.xlu0 %350
    %v352 = vsel %vm47, %v348, 0.0
    %353 = vadd.xlane.f32.xlu0 %v352
    %v354 = vpop.xlane.xlu0 %353
    %v355 = vmul.f32 %v351, %v150
    %v356 = vmul.f32 %v354, %v150
    %v357 = vsub.f32 %v339, %v355
    %v358 = vsub.f32 %v340, %v356
    %v359 = vsub.f32 %v341, %v355
    %v360 = vsub.f32 %v342, %v356
    %v361 = vmul.f32 %v357, %v357
    %v362 = vmul.f32 %v358, %v358
    %v363 = vmul.f32 %v359, %v359
    %v364 = vmul.f32 %v360, %v360
    %v365 = vsel %vm47, %v361, 0.0
    %v366 = vsel %vm47, %v363, 0.0
    %v367 = vadd.f32 %v365, %v366
    %v368 = vsel %vm47, %v362, 0.0
    %v369 = vsel %vm47, %v364, 0.0
    %v370 = vadd.f32 %v368, %v369
    %v371 = vsel %vm47, %v367, 0.0
    %372 = vadd.xlane.f32.xlu0 %v371
    %v373 = vpop.xlane.xlu0 %372
    %v374 = vsel %vm47, %v370, 0.0
    %375 = vadd.xlane.f32.xlu0 %v374
    %v376 = vpop.xlane.xlu0 %375
    %v377 = vmul.f32 %v373, %v150
    %v378 = vmul.f32 %v376, %v150
    %v379 = vadd.f32 %v377, 1e-05
    %v380 = vadd.f32 %v378, 1e-05
    %v381 = vrsqrt.pop %v379
    %v382 = vmul.f32 %v381, %v379
    %v383 = vmul.f32 %v382, %v381
    %v384 = vmul.f32 0.5, %v383
    %v385 = vsub.f32 1.5, %v384
    %v386 = vmul.f32 %v381, %v385
    %vm387 = vweird.f32 %v379
    %vm388 = vweird.f32 %v381
    %vm389 = vmor %vm387, %vm388
    %v390 = vsel %vm389, %v381, %v386
    %v391 = vrsqrt.pop %v380
    %v392 = vmul.f32 %v391, %v380
    %v393 = vmul.f32 %v392, %v391
    %v394 = vmul.f32 0.5, %v393
    %v395 = vsub.f32 1.5, %v394
    %v396 = vmul.f32 %v391, %v395
    %vm397 = vweird.f32 %v380
    %vm398 = vweird.f32 %v391
    %vm399 = vmor %vm397, %vm398
    %v400 = vsel %vm399, %v391, %v396
    %v401 = vmul.f32 %v357, %v390
    %v402 = vmul.f32 %v358, %v400
    %v403 = vmul.f32 %v359, %v390
    %v404 = vmul.f32 %v360, %v400
    %s405 = scalar_lea.vmem %s5, 16
    %v406 = vld [vmem:[%s405] sm:$0xff]
    %v407 = vld [vmem:[%s405 + $0x8] sm:$0xff]
    %409 = vset.pattern.permute.xlu0 0
    %410 = vperm.xlu0 %409, %v406
    %v411 = vpop.permute.xlu0 %410
    %414 = vset.pattern.permute.xlu0 0
    %415 = vperm.xlu0 %414, %v407
    %v416 = vpop.permute.xlu0 %415
    %v418 = vmul.f32 %v401, %v411
    %v419 = vmul.f32 %v402, %v416
    %v420 = vmul.f32 %v403, %v411
    %v421 = vmul.f32 %v404, %v416
    %s422 = scalar_lea.vmem %s6, 16
    %v423 = vld [vmem:[%s422] sm:$0xff]
    %v424 = vld [vmem:[%s422 + $0x8] sm:$0xff]
    %426 = vset.pattern.permute.xlu0 0
    %427 = vperm.xlu0 %426, %v423
    %v428 = vpop.permute.xlu0 %427
    %431 = vset.pattern.permute.xlu0 0
    %432 = vperm.xlu0 %431, %v424
    %v433 = vpop.permute.xlu0 %432
    %v435 = vadd.f32 %v418, %v428
    %v436 = vadd.f32 %v419, %v433
    %v437 = vadd.f32 %v420, %v428
    %v438 = vadd.f32 %v421, %v433
    %v439 = vmax.f32 %v435, 0.0
    %v440 = vmax.f32 %v436, 0.0
    %v441 = vmax.f32 %v437, 0.0
    %v442 = vmax.f32 %v438, 0.0
    %443 = vst.msk [vmem:[#allocation3] sm:$0xff] %vm47, %v439
    %444 = vst.msk [vmem:[#allocation3 + $0x8] sm:$0xff] %vm47, %v440
    %445 = vst.msk [vmem:[#allocation3 + $0x10] sm:$0xff] %vm47, %v441
    %446 = vst.msk [vmem:[#allocation3 + $0x18] sm:$0xff] %vm47, %v442
    %s447 = scalar_lea.vmem %s3, 32
    %v448 = vld [vmem:[%s447] sm:$0xff]
    %v449 = vld [vmem:[%s447 + $0x8] sm:$0xff]
    %v450 = vld [vmem:[%s2] sm:$0xff]
    %v451 = vld [vmem:[%s2 + $0x8] sm:$0xff]
    %s452 = scalar_lea.vmem %s4, 32
    %v453 = vld [vmem:[%s452] sm:$0xff]
    %v454 = vld [vmem:[%s452 + $0x8] sm:$0xff]
    %456 = vset.pattern.permute.xlu0 0
    %457 = vperm.xlu0 %456, %v453
    %v458 = vpop.permute.xlu0 %457
    %461 = vset.pattern.permute.xlu0 0
    %462 = vperm.xlu0 %461, %v454
    %v463 = vpop.permute.xlu0 %462
    %v466 = vsel %vm47, %v448, 0
    %v469 = vsel %vm47, %v449, 0
    %471 = vmatpush.msra.mxu0 0.0
    %472 = vmatpush.msra.mxu0 0.0
    %473 = vmatpush.msra.mxu0 0.0
    %474 = vmatpush.msra.mxu0 0.0
    %475 = vmatpush.msra.mxu0 0.0
    %476 = vmatpush.msra.mxu0 0.0
    %477 = vmatpush.msra.mxu0 0.0
    %478 = vmatpush.msra.mxu0 0.0
    %479 = vmatpush.msra.mxu0 0.0
    %480 = vmatpush.msra.mxu0 0.0
    %481 = vmatpush.msra.mxu0 0.0
    %482 = vmatpush.msra.mxu0 0.0
    %483 = vmatpush.msra.mxu0 0.0
    %484 = vmatpush.msra.mxu0 0.0
    %485 = vmatpush.msra.mxu0 %v451
    %486 = vmatpush.msra.mxu0 %v450
    %487 = vmatmul.f32.gmra.mxu0 %v466
    %v488 = vpop.f32.mrf.mxu0
    %v489 = vadd.f32 %v458, %v488
    %490 = vmatmul.f32.gmra.mxu0 %v469
    %v491 = vpop.f32.mrf.mxu0
    %v492 = vadd.f32 %v463, %v491
    %493 = vdwg.mxu0
    %494 = vst.msk [vmem:[#allocation4] sm:$0xff] %vm47, %v489
    %495 = vst.msk [vmem:[#allocation4 + $0x8] sm:$0xff] %vm47, %v492
    %v496 = vld [vmem:[%s447] sm:$0xff]
    %v497 = vld [vmem:[%s447 + $0x8] sm:$0xff]
    %s498 = scalar_lea.vmem %s2, 16
    %v499 = vld [vmem:[%s498] sm:$0xff]
    %v500 = vld [vmem:[%s498 + $0x8] sm:$0xff]
    %v501 = vld [vmem:[%s452] sm:$0xff]
    %v502 = vld [vmem:[%s452 + $0x8] sm:$0xff]
    %504 = vset.pattern.permute.xlu0 0
    %505 = vperm.xlu0 %504, %v501
    %v506 = vpop.permute.xlu0 %505
    %509 = vset.pattern.permute.xlu0 0
    %510 = vperm.xlu0 %509, %v502
    %v511 = vpop.permute.xlu0 %510
    %v514 = vsel %vm47, %v496, 0
    %v517 = vsel %vm47, %v497, 0
    %519 = vmatpush.msra.mxu0 0.0
    %520 = vmatpush.msra.mxu0 0.0
    %521 = vmatpush.msra.mxu0 0.0
    %522 = vmatpush.msra.mxu0 0.0
    %523 = vmatpush.msra.mxu0 0.0
    %524 = vmatpush.msra.mxu0 0.0
    %525 = vmatpush.msra.mxu0 0.0
    %526 = vmatpush.msra.mxu0 0.0
    %527 = vmatpush.msra.mxu0 0.0
    %528 = vmatpush.msra.mxu0 0.0
    %529 = vmatpush.msra.mxu0 0.0
    %530 = vmatpush.msra.mxu0 0.0
    %531 = vmatpush.msra.mxu0 0.0
    %532 = vmatpush.msra.mxu0 0.0
    %533 = vmatpush.msra.mxu0 %v500
    %534 = vmatpush.msra.mxu0 %v499
    %535 = vmatmul.f32.gmra.mxu0 %v514
    %v536 = vpop.f32.mrf.mxu0
    %v537 = vadd.f32 %v506, %v536
    %538 = vmatmul.f32.gmra.mxu0 %v517
    %v539 = vpop.f32.mrf.mxu0
    %v540 = vadd.f32 %v511, %v539
    %541 = vdwg.mxu0
    %s542 = scalar_lea.vmem [#allocation4], 16
    %543 = vst.msk [vmem:[%s542] sm:$0xff] %vm47, %v537
    %544 = vst.msk [vmem:[%s542 + $0x8] sm:$0xff] %vm47, %v540
    %v545 = vld [vmem:[#allocation4] sm:$0xff]
    %v546 = vld [vmem:[#allocation4 + $0x8] sm:$0xff]
    %v547 = vld [vmem:[#allocation4 + $0x10] sm:$0xff]
    %v548 = vld [vmem:[#allocation4 + $0x18] sm:$0xff]
    %v549 = vsel %vm47, %v545, 0.0
    %v550 = vsel %vm47, %v547, 0.0
    %v551 = vadd.f32 %v549, %v550
    %v552 = vsel %vm47, %v546, 0.0
    %v553 = vsel %vm47, %v548, 0.0
    %v554 = vadd.f32 %v552, %v553
    %v555 = vsel %vm47, %v551, 0.0
    %556 = vadd.xlane.f32.xlu0 %v555
    %v557 = vpop.xlane.xlu0 %556
    %v558 = vsel %vm47, %v554, 0.0
    %559 = vadd.xlane.f32.xlu0 %v558
    %v560 = vpop.xlane.xlu0 %559
    %v561 = vmul.f32 %v557, %v150
    %v562 = vmul.f32 %v560, %v150
    %v563 = vsub.f32 %v545, %v561
    %v564 = vsub.f32 %v546, %v562
    %v565 = vsub.f32 %v547, %v561
    %v566 = vsub.f32 %v548, %v562
    %v567 = vmul.f32 %v563, %v563
    %v568 = vmul.f32 %v564, %v564
    %v569 = vmul.f32 %v565, %v565
    %v570 = vmul.f32 %v566, %v566
    %v571 = vsel %vm47, %v567, 0.0
    %v572 = vsel %vm47, %v569, 0.0
    %v573 = vadd.f32 %v571, %v572
    %v574 = vsel %vm47, %v568, 0.0
    %v575 = vsel %vm47, %v570, 0.0
    %v576 = vadd.f32 %v574, %v575
    %v577 = vsel %vm47, %v573, 0.0
    %578 = vadd.xlane.f32.xlu0 %v577
    %v579 = vpop.xlane.xlu0 %578
    %v580 = vsel %vm47, %v576, 0.0
    %581 = vadd.xlane.f32.xlu0 %v580
    %v582 = vpop.xlane.xlu0 %581
    %v583 = vmul.f32 %v579, %v150
    %v584 = vmul.f32 %v582, %v150
    %v585 = vadd.f32 %v583, 1e-05
    %v586 = vadd.f32 %v584, 1e-05
    %v587 = vrsqrt.pop %v585
    %v588 = vmul.f32 %v587, %v585
    %v589 = vmul.f32 %v588, %v587
    %v590 = vmul.f32 0.5, %v589
    %v591 = vsub.f32 1.5, %v590
    %v592 = vmul.f32 %v587, %v591
    %vm593 = vweird.f32 %v585
    %vm594 = vweird.f32 %v587
    %vm595 = vmor %vm593, %vm594
    %v596 = vsel %vm595, %v587, %v592
    %v597 = vrsqrt.pop %v586
    %v598 = vmul.f32 %v597, %v586
    %v599 = vmul.f32 %v598, %v597
    %v600 = vmul.f32 0.5, %v599
    %v601 = vsub.f32 1.5, %v600
    %v602 = vmul.f32 %v597, %v601
    %vm603 = vweird.f32 %v586
    %vm604 = vweird.f32 %v597
    %vm605 = vmor %vm603, %vm604
    %v606 = vsel %vm605, %v597, %v602
    %v607 = vmul.f32 %v563, %v596
    %v608 = vmul.f32 %v564, %v606
    %v609 = vmul.f32 %v565, %v596
    %v610 = vmul.f32 %v566, %v606
    %s611 = scalar_lea.vmem %s5, 32
    %v612 = vld [vmem:[%s611] sm:$0xff]
    %v613 = vld [vmem:[%s611 + $0x8] sm:$0xff]
    %615 = vset.pattern.permute.xlu0 0
    %616 = vperm.xlu0 %615, %v612
    %v617 = vpop.permute.xlu0 %616
    %620 = vset.pattern.permute.xlu0 0
    %621 = vperm.xlu0 %620, %v613
    %v622 = vpop.permute.xlu0 %621
    %v624 = vmul.f32 %v607, %v617
    %v625 = vmul.f32 %v608, %v622
    %v626 = vmul.f32 %v609, %v617
    %v627 = vmul.f32 %v610, %v622
    %s628 = scalar_lea.vmem %s6, 32
    %v629 = vld [vmem:[%s628] sm:$0xff]
    %v630 = vld [vmem:[%s628 + $0x8] sm:$0xff]
    %632 = vset.pattern.permute.xlu0 0
    %633 = vperm.xlu0 %632, %v629
    %v634 = vpop.permute.xlu0 %633
    %637 = vset.pattern.permute.xlu0 0
    %638 = vperm.xlu0 %637, %v630
    %v639 = vpop.permute.xlu0 %638
    %v641 = vadd.f32 %v624, %v634
    %v642 = vadd.f32 %v625, %v639
    %v643 = vadd.f32 %v626, %v634
    %v644 = vadd.f32 %v627, %v639
    %v645 = vmax.f32 %v641, 0.0
    %v646 = vmax.f32 %v642, 0.0
    %v647 = vmax.f32 %v643, 0.0
    %v648 = vmax.f32 %v644, 0.0
    %649 = vst.msk [vmem:[#allocation4] sm:$0xff] %vm47, %v645
    %650 = vst.msk [vmem:[#allocation4 + $0x8] sm:$0xff] %vm47, %v646
    %651 = vst.msk [vmem:[#allocation4 + $0x10] sm:$0xff] %vm47, %v647
    %652 = vst.msk [vmem:[#allocation4 + $0x18] sm:$0xff] %vm47, %v648
    %v653 = vld [vmem:[#allocation2] sm:$0xff]
    %v654 = vld [vmem:[#allocation3] sm:$0xff]
    %v655 = vld [vmem:[#allocation4] sm:$0xff]
    %656 = vxpose.xlu0.b32.start [1/16] %v653, 128
    %657 = vxpose.xlu0.b32.cont [2/16] 0.0, 128
    %658 = vxpose.xlu0.b32.cont [3/16] 0.0, 128
    %659 = vxpose.xlu0.b32.cont [4/16] 0.0, 128
    %660 = vxpose.xlu0.b32.cont [5/16] 0.0, 128
    %661 = vxpose.xlu0.b32.cont [6/16] 0.0, 128
    %662 = vxpose.xlu0.b32.cont [7/16] 0.0, 128
    %663 = vxpose.xlu0.b32.cont [8/16] 0.0, 128
    %664 = vxpose.xlu0.b32.cont [9/16] 0.0, 128
    %665 = vxpose.xlu0.b32.cont [10/16] 0.0, 128
    %666 = vxpose.xlu0.b32.cont [11/16] 0.0, 128
    %667 = vxpose.xlu0.b32.cont [12/16] 0.0, 128
    %668 = vxpose.xlu0.b32.cont [13/16] 0.0, 128
    %669 = vxpose.xlu0.b32.cont [14/16] 0.0, 128
    %670 = vxpose.xlu0.b32.cont [15/16] 0.0, 128
    %671 = vxpose.xlu0.b32.end [16/16] 0.0, 128
    %v672 = vpop.trf.xlu0
    %v673 = vpop.trf.xlu0
    %v674 = vpop.trf.xlu0
    %v675 = vpop.trf.xlu0
    %v676 = vpop.trf.xlu0
    %v677 = vpop.trf.xlu0
    %v678 = vpop.trf.xlu0
    %v679 = vpop.trf.xlu0
    %v680 = vpop.trf.xlu0
    %v681 = vpop.trf.xlu0
    %v682 = vpop.trf.xlu0
    %v683 = vpop.trf.xlu0
    %v684 = vpop.trf.xlu0
    %v685 = vpop.trf.xlu0
    %v686 = vpop.trf.xlu0
    %v687 = vpop.trf.xlu0
    %vm688 = vcmask 64512
    %v690 = vsel %vm688, %v672, 0
    %v693 = vsel %vm688, %v673, 0
    %695 = vmatpush.msra.mxu0 0.0
    %696 = vmatpush.msra.mxu0 0.0
    %697 = vmatpush.msra.mxu0 0.0
    %698 = vmatpush.msra.mxu0 0.0
    %699 = vmatpush.msra.mxu0 0.0
    %700 = vmatpush.msra.mxu0 0.0
    %701 = vmatpush.msra.mxu0 0.0
    %702 = vmatpush.msra.mxu0 0.0
    %703 = vmatpush.msra.mxu0 0.0
    %704 = vmatpush.msra.mxu0 0.0
    %705 = vmatpush.msra.mxu0 0.0
    %706 = vmatpush.msra.mxu0 0.0
    %707 = vmatpush.msra.mxu0 0.0
    %708 = vmatpush.msra.mxu0 0.0
    %709 = vmatpush.msra.mxu0 0.0
    %710 = vmatpush.msra.mxu0 %v654
    %711 = vmatmul.f32.gmra.mxu0 %v690
    %v712 = vpop.f32.mrf.mxu0
    %v713 = vadd.f32 0.0, %v712
    %714 = vmatmul.f32.gmra.mxu0 %v693
    %v715 = vpop.f32.mrf.mxu0
    %v716 = vadd.f32 0.0, %v715
    %717 = vdwg.mxu0
    %v718 = vsel %vm47, %v713, -inf
    %719 = vmax.xlane.f32.xlu0 %v718
    %v720 = vpop.xlane.xlu0 %719
    %v721 = vsel %vm47, %v716, -inf
    %722 = vmax.xlane.f32.xlu0 %v721
    %v723 = vpop.xlane.xlu0 %722
    %v724 = vsub.f32 %v713, %v720
    %v725 = vsub.f32 %v716, %v723
    %v726 = vmul.f32 %v724, 1.442695
    %v727 = vpow.pop %v726
    %v728 = vmul.f32 %v725, 1.442695
    %v729 = vpow.pop %v728
    %v730 = vsel %vm47, %v727, 0.0
    %731 = vadd.xlane.f32.xlu0 %v730
    %v732 = vpop.xlane.xlu0 %731
    %v733 = vsel %vm47, %v729, 0.0
    %734 = vadd.xlane.f32.xlu0 %v733
    %v735 = vpop.xlane.xlu0 %734
    %v736 = vrcp.pop %v732
    %v737 = vmul.f32 %v732, %v736
    %v738 = vsub.f32 1.0, %v737
    %v739 = vmul.f32 %v736, %v738
    %v740 = vadd.f32 %v736, %v739
    %vm741 = vweird.f32 %v732
    %vm742 = vweird.f32 %v736
    %vm743 = vmor %vm741, %vm742
    %v744 = vsel %vm743, %v736, %v740
    %v745 = vand.u32 2147483647, %v732
    %vm746 = vcmp.eq.f32.partialorder %v745, 8.507059e+37
    %v747 = vand.u32 %v732, 2147483648
    %v748 = vor.u32 1.1754944e-38, %v747
    %v749 = vsel %vm746, %v748, %v744
    %v750 = vmul.f32 %v727, %v749
    %v751 = vrcp.pop %v735
    %v752 = vmul.f32 %v735, %v751
    %v753 = vsub.f32 1.0, %v752
    %v754 = vmul.f32 %v751, %v753
    %v755 = vadd.f32 %v751, %v754
    %vm756 = vweird.f32 %v735
    %vm757 = vweird.f32 %v751
    %vm758 = vmor %vm756, %vm757
    %v759 = vsel %vm758, %v751, %v755
    %v760 = vand.u32 2147483647, %v735
    %vm761 = vcmp.eq.f32.partialorder %v760, 8.507059e+37
    %v762 = vand.u32 %v735, 2147483648
    %v763 = vor.u32 1.1754944e-38, %v762
    %v764 = vsel %vm761, %v763, %v759
    %v765 = vmul.f32 %v729, %v764
    %v767 = vsel %vm47, %v655, 0
    %v770 = vsel %vm47, %v750, 0
    %v773 = vsel %vm47, %v765, 0
    %775 = vmatpush.xpose.msra.mxu0 0.0
    %776 = vmatpush.xpose.msra.mxu0 0.0
    %777 = vmatpush.xpose.msra.mxu0 0.0
    %778 = vmatpush.xpose.msra.mxu0 0.0
    %779 = vmatpush.xpose.msra.mxu0 0.0
    %780 = vmatpush.xpose.msra.mxu0 0.0
    %781 = vmatpush.xpose.msra.mxu0 0.0
    %782 = vmatpush.xpose.msra.mxu0 0.0
    %783 = vmatpush.xpose.msra.mxu0 0.0
    %784 = vmatpush.xpose.msra.mxu0 0.0
    %785 = vmatpush.xpose.msra.mxu0 0.0
    %786 = vmatpush.xpose.msra.mxu0 0.0
    %787 = vmatpush.xpose.msra.mxu0 0.0
    %788 = vmatpush.xpose.msra.mxu0 0.0
    %789 = vmatpush.xpose.msra.mxu0 %v773
    %790 = vmatpush.xpose.msra.mxu0 %v770
    %791 = vmatmul.f32.gmra.mxu0 %v767
    %v792 = vpop.f32.mrf.mxu0
    %v793 = vadd.f32 0.0, %v792
    %794 = vdwg.mxu0
    %795 = vst.msk [vmem:[#allocation5] sm:$0xff] %vm47, %v793
    %v796 = vld [vmem:[%s125] sm:$0xff]
    %v797 = vld [vmem:[%s336] sm:$0xff]
    %v798 = vld [vmem:[%s542] sm:$0xff]
    %799 = vxpose.xlu0.b32.start [1/16] %v796, 128
    %800 = vxpose.xlu0.b32.cont [2/16] 0.0, 128
    %801 = vxpose.xlu0.b32.cont [3/16] 0.0, 128
    %802 = vxpose.xlu0.b32.cont [4/16] 0.0, 128
    %803 = vxpose.xlu0.b32.cont [5/16] 0.0, 128
    %804 = vxpose.xlu0.b32.cont [6/16] 0.0, 128
    %805 = vxpose.xlu0.b32.cont [7/16] 0.0, 128
    %806 = vxpose.xlu0.b32.cont [8/16] 0.0, 128
    %807 = vxpose.xlu0.b32.cont [9/16] 0.0, 128
    %808 = vxpose.xlu0.b32.cont [10/16] 0.0, 128
    %809 = vxpose.xlu0.b32.cont [11/16] 0.0, 128
    %810 = vxpose.xlu0.b32.cont [12/16] 0.0, 128
    %811 = vxpose.xlu0.b32.cont [13/16] 0.0, 128
    %812 = vxpose.xlu0.b32.cont [14/16] 0.0, 128
    %813 = vxpose.xlu0.b32.cont [15/16] 0.0, 128
    %814 = vxpose.xlu0.b32.end [16/16] 0.0, 128
    %v815 = vpop.trf.xlu0
    %v816 = vpop.trf.xlu0
    %v817 = vpop.trf.xlu0
    %v818 = vpop.trf.xlu0
    %v819 = vpop.trf.xlu0
    %v820 = vpop.trf.xlu0
    %v821 = vpop.trf.xlu0
    %v822 = vpop.trf.xlu0
    %v823 = vpop.trf.xlu0
    %v824 = vpop.trf.xlu0
    %v825 = vpop.trf.xlu0
    %v826 = vpop.trf.xlu0
    %v827 = vpop.trf.xlu0
    %v828 = vpop.trf.xlu0
    %v829 = vpop.trf.xlu0
    %v830 = vpop.trf.xlu0
    %v832 = vsel %vm688, %v815, 0
    %v835 = vsel %vm688, %v816, 0
    %837 = vmatpush.msra.mxu0 0.0
    %838 = vmatpush.msra.mxu0 0.0
    %839 = vmatpush.msra.mxu0 0.0
    %840 = vmatpush.msra.mxu0 0.0
    %841 = vmatpush.msra.mxu0 0.0
    %842 = vmatpush.msra.mxu0 0.0
    %843 = vmatpush.msra.mxu0 0.0
    %844 = vmatpush.msra.mxu0 0.0
    %845 = vmatpush.msra.mxu0 0.0
    %846 = vmatpush.msra.mxu0 0.0
    %847 = vmatpush.msra.mxu0 0.0
    %848 = vmatpush.msra.mxu0 0.0
    %849 = vmatpush.msra.mxu0 0.0
    %850 = vmatpush.msra.mxu0 0.0
    %851 = vmatpush.msra.mxu0 0.0
    %852 = vmatpush.msra.mxu0 %v797
    %853 = vmatmul.f32.gmra.mxu0 %v832
    %v854 = vpop.f32.mrf.mxu0
    %v855 = vadd.f32 0.0, %v854
    %856 = vmatmul.f32.gmra.mxu0 %v835
    %v857 = vpop.f32.mrf.mxu0
    %v858 = vadd.f32 0.0, %v857
    %859 = vdwg.mxu0
    %v860 = vsel %vm47, %v855, -inf
    %861 = vmax.xlane.f32.xlu0 %v860
    %v862 = vpop.xlane.xlu0 %861
    %v863 = vsel %vm47, %v858, -inf
    %864 = vmax.xlane.f32.xlu0 %v863
    %v865 = vpop.xlane.xlu0 %864
    %v866 = vsub.f32 %v855, %v862
    %v867 = vsub.f32 %v858, %v865
    %v868 = vmul.f32 %v866, 1.442695
    %v869 = vpow.pop %v868
    %v870 = vmul.f32 %v867, 1.442695
    %v871 = vpow.pop %v870
    %v872 = vsel %vm47, %v869, 0.0
    %873 = vadd.xlane.f32.xlu0 %v872
    %v874 = vpop.xlane.xlu0 %873
    %v875 = vsel %vm47, %v871, 0.0
    %876 = vadd.xlane.f32.xlu0 %v875
    %v877 = vpop.xlane.xlu0 %876
    %v878 = vrcp.pop %v874
    %v879 = vmul.f32 %v874, %v878
    %v880 = vsub.f32 1.0, %v879
    %v881 = vmul.f32 %v878, %v880
    %v882 = vadd.f32 %v878, %v881
    %vm883 = vweird.f32 %v874
    %vm884 = vweird.f32 %v878
    %vm885 = vmor %vm883, %vm884
    %v886 = vsel %vm885, %v878, %v882
    %v887 = vand.u32 2147483647, %v874
    %vm888 = vcmp.eq.f32.partialorder %v887, 8.507059e+37
    %v889 = vand.u32 %v874, 2147483648
    %v890 = vor.u32 1.1754944e-38, %v889
    %v891 = vsel %vm888, %v890, %v886
    %v892 = vmul.f32 %v869, %v891
    %v893 = vrcp.pop %v877
    %v894 = vmul.f32 %v877, %v893
    %v895 = vsub.f32 1.0, %v894
    %v896 = vmul.f32 %v893, %v895
    %v897 = vadd.f32 %v893, %v896
    %vm898 = vweird.f32 %v877
    %vm899 = vweird.f32 %v893
    %vm900 = vmor %vm898, %vm899
    %v901 = vsel %vm900, %v893, %v897
    %v902 = vand.u32 2147483647, %v877
    %vm903 = vcmp.eq.f32.partialorder %v902, 8.507059e+37
    %v904 = vand.u32 %v877, 2147483648
    %v905 = vor.u32 1.1754944e-38, %v904
    %v906 = vsel %vm903, %v905, %v901
    %v907 = vmul.f32 %v871, %v906
    %v909 = vsel %vm47, %v798, 0
    %v912 = vsel %vm47, %v892, 0
    %v915 = vsel %vm47, %v907, 0
    %917 = vmatpush.xpose.msra.mxu0 0.0
    %918 = vmatpush.xpose.msra.mxu0 0.0
    %919 = vmatpush.xpose.msra.mxu0 0.0
    %920 = vmatpush.xpose.msra.mxu0 0.0
    %921 = vmatpush.xpose.msra.mxu0 0.0
    %922 = vmatpush.xpose.msra.mxu0 0.0
    %923 = vmatpush.xpose.msra.mxu0 0.0
    %924 = vmatpush.xpose.msra.mxu0 0.0
    %925 = vmatpush.xpose.msra.mxu0 0.0
    %926 = vmatpush.xpose.msra.mxu0 0.0
    %927 = vmatpush.xpose.msra.mxu0 0.0
    %928 = vmatpush.xpose.msra.mxu0 0.0
    %929 = vmatpush.xpose.msra.mxu0 0.0
    %930 = vmatpush.xpose.msra.mxu0 0.0
    %931 = vmatpush.xpose.msra.mxu0 %v915
    %932 = vmatpush.xpose.msra.mxu0 %v912
    %933 = vmatmul.f32.gmra.mxu0 %v909
    %v934 = vpop.f32.mrf.mxu0
    %v935 = vadd.f32 0.0, %v934
    %936 = vdwg.mxu0
    %s937 = scalar_lea.vmem [#allocation5], 16
    %938 = vst.msk [vmem:[%s937] sm:$0xff] %vm47, %v935
    %v939 = vld [vmem:[#allocation2 + $0x8] sm:$0xff]
    %v940 = vld [vmem:[#allocation3 + $0x8] sm:$0xff]
    %v941 = vld [vmem:[#allocation4 + $0x8] sm:$0xff]
    %942 = vxpose.xlu0.b32.start [1/16] %v939, 128
    %943 = vxpose.xlu0.b32.cont [2/16] 0.0, 128
    %944 = vxpose.xlu0.b32.cont [3/16] 0.0, 128
    %945 = vxpose.xlu0.b32.cont [4/16] 0.0, 128
    %946 = vxpose.xlu0.b32.cont [5/16] 0.0, 128
    %947 = vxpose.xlu0.b32.cont [6/16] 0.0, 128
    %948 = vxpose.xlu0.b32.cont [7/16] 0.0, 128
    %949 = vxpose.xlu0.b32.cont [8/16] 0.0, 128
    %950 = vxpose.xlu0.b32.cont [9/16] 0.0, 128
    %951 = vxpose.xlu0.b32.cont [10/16] 0.0, 128
    %952 = vxpose.xlu0.b32.cont [11/16] 0.0, 128
    %953 = vxpose.xlu0.b32.cont [12/16] 0.0, 128
    %954 = vxpose.xlu0.b32.cont [13/16] 0.0, 128
    %955 = vxpose.xlu0.b32.cont [14/16] 0.0, 128
    %956 = vxpose.xlu0.b32.cont [15/16] 0.0, 128
    %957 = vxpose.xlu0.b32.end [16/16] 0.0, 128
    %v958 = vpop.trf.xlu0
    %v959 = vpop.trf.xlu0
    %v960 = vpop.trf.xlu0
    %v961 = vpop.trf.xlu0
    %v962 = vpop.trf.xlu0
    %v963 = vpop.trf.xlu0
    %v964 = vpop.trf.xlu0
    %v965 = vpop.trf.xlu0
    %v966 = vpop.trf.xlu0
    %v967 = vpop.trf.xlu0
    %v968 = vpop.trf.xlu0
    %v969 = vpop.trf.xlu0
    %v970 = vpop.trf.xlu0
    %v971 = vpop.trf.xlu0
    %v972 = vpop.trf.xlu0
    %v973 = vpop.trf.xlu0
    %v975 = vsel %vm688, %v958, 0
    %v978 = vsel %vm688, %v959, 0
    %980 = vmatpush.msra.mxu0 0.0
    %981 = vmatpush.msra.mxu0 0.0
    %982 = vmatpush.msra.mxu0 0.0
    %983 = vmatpush.msra.mxu0 0.0
    %984 = vmatpush.msra.mxu0 0.0
    %985 = vmatpush.msra.mxu0 0.0
    %986 = vmatpush.msra.mxu0 0.0
    %987 = vmatpush.msra.mxu0 0.0
    %988 = vmatpush.msra.mxu0 0.0
    %989 = vmatpush.msra.mxu0 0.0
    %990 = vmatpush.msra.mxu0 0.0
    %991 = vmatpush.msra.mxu0 0.0
    %992 = vmatpush.msra.mxu0 0.0
    %993 = vmatpush.msra.mxu0 0.0
    %994 = vmatpush.msra.mxu0 0.0
    %995 = vmatpush.msra.mxu0 %v940
    %996 = vmatmul.f32.gmra.mxu0 %v975
    %v997 = vpop.f32.mrf.mxu0
    %v998 = vadd.f32 0.0, %v997
    %999 = vmatmul.f32.gmra.mxu0 %v978
    %v1000 = vpop.f32.mrf.mxu0
    %v1001 = vadd.f32 0.0, %v1000
    %1002 = vdwg.mxu0
    %v1003 = vsel %vm47, %v998, -inf
    %1004 = vmax.xlane.f32.xlu0 %v1003
    %v1005 = vpop.xlane.xlu0 %1004
    %v1006 = vsel %vm47, %v1001, -inf
    %1007 = vmax.xlane.f32.xlu0 %v1006
    %v1008 = vpop.xlane.xlu0 %1007
    %v1009 = vsub.f32 %v998, %v1005
    %v1010 = vsub.f32 %v1001, %v1008
    %v1011 = vmul.f32 %v1009, 1.442695
    %v1012 = vpow.pop %v1011
    %v1013 = vmul.f32 %v1010, 1.442695
    %v1014 = vpow.pop %v1013
    %v1015 = vsel %vm47, %v1012, 0.0
    %1016 = vadd.xlane.f32.xlu0 %v1015
    %v1017 = vpop.xlane.xlu0 %1016
    %v1018 = vsel %vm47, %v1014, 0.0
    %1019 = vadd.xlane.f32.xlu0 %v1018
    %v1020 = vpop.xlane.xlu0 %1019
    %v1021 = vrcp.pop %v1017
    %v1022 = vmul.f32 %v1017, %v1021
    %v1023 = vsub.f32 1.0, %v1022
    %v1024 = vmul.f32 %v1021, %v1023
    %v1025 = vadd.f32 %v1021, %v1024
    %vm1026 = vweird.f32 %v1017
    %vm1027 = vweird.f32 %v1021
    %vm1028 = vmor %vm1026, %vm1027
    %v1029 = vsel %vm1028, %v1021, %v1025
    %v1030 = vand.u32 2147483647, %v1017
    %vm1031 = vcmp.eq.f32.partialorder %v1030, 8.507059e+37
    %v1032 = vand.u32 %v1017, 2147483648
    %v1033 = vor.u32 1.1754944e-38, %v1032
    %v1034 = vsel %vm1031, %v1033, %v1029
    %v1035 = vmul.f32 %v1012, %v1034
    %v1036 = vrcp.pop %v1020
    %v1037 = vmul.f32 %v1020, %v1036
    %v1038 = vsub.f32 1.0, %v1037
    %v1039 = vmul.f32 %v1036, %v1038
    %v1040 = vadd.f32 %v1036, %v1039
    %vm1041 = vweird.f32 %v1020
    %vm1042 = vweird.f32 %v1036
    %vm1043 = vmor %vm1041, %vm1042
    %v1044 = vsel %vm1043, %v1036, %v1040
    %v1045 = vand.u32 2147483647, %v1020
    %vm1046 = vcmp.eq.f32.partialorder %v1045, 8.507059e+37
    %v1047 = vand.u32 %v1020, 2147483648
    %v1048 = vor.u32 1.1754944e-38, %v1047
    %v1049 = vsel %vm1046, %v1048, %v1044
    %v1050 = vmul.f32 %v1014, %v1049
    %v1051 = vld [vmem:[#allocation5] sm:$0xff]
    %v1052 = vsub.f32 0.0, %v1051
    %v1053 = vmul.f32 %v1052, 1.442695
    %v1054 = vpow.pop %v1053
    %v1055 = vadd.f32 %v1054, 1.0
    %v1056 = vrcp.pop %v1055
    %v1057 = vmul.f32 %v1055, %v1056
    %v1058 = vsub.f32 1.0, %v1057
    %v1059 = vmul.f32 %v1056, %v1058
    %v1060 = vadd.f32 %v1056, %v1059
    %vm1061 = vweird.f32 %v1055
    %vm1062 = vweird.f32 %v1056
    %vm1063 = vmor %vm1061, %vm1062
    %v1064 = vsel %vm1063, %v1056, %v1060
    %v1065 = vand.u32 2147483647, %v1055
    %vm1066 = vcmp.eq.f32.partialorder %v1065, 8.507059e+37
    %v1067 = vand.u32 %v1055, 2147483648
    %v1068 = vor.u32 1.1754944e-38, %v1067
    %v1069 = vsel %vm1066, %v1068, %v1064
    %v1070 = vmul.f32 1.0, %v1069
    %v1071 = vmul.f32 %v941, %v1070
    %v1073 = vsel %vm47, %v1071, 0
    %v1076 = vsel %vm47, %v1035, 0
    %v1079 = vsel %vm47, %v1050, 0
    %1081 = vmatpush.xpose.msra.mxu0 0.0
    %1082 = vmatpush.xpose.msra.mxu0 0.0
    %1083 = vmatpush.xpose.msra.mxu0 0.0
    %1084 = vmatpush.xpose.msra.mxu0 0.0
    %1085 = vmatpush.xpose.msra.mxu0 0.0
    %1086 = vmatpush.xpose.msra.mxu0 0.0
    %1087 = vmatpush.xpose.msra.mxu0 0.0
    %1088 = vmatpush.xpose.msra.mxu0 0.0
    %1089 = vmatpush.xpose.msra.mxu0 0.0
    %1090 = vmatpush.xpose.msra.mxu0 0.0
    %1091 = vmatpush.xpose.msra.mxu0 0.0
    %1092 = vmatpush.xpose.msra.mxu0 0.0
    %1093 = vmatpush.xpose.msra.mxu0 0.0
    %1094 = vmatpush.xpose.msra.mxu0 0.0
    %1095 = vmatpush.xpose.msra.mxu0 %v1079
    %1096 = vmatpush.xpose.msra.mxu0 %v1076
    %1097 = vmatmul.f32.gmra.mxu0 %v1073
    %v1098 = vpop.f32.mrf.mxu0
    %v1099 = vadd.f32 0.0, %v1098
    %1100 = vdwg.mxu0
    %1101 = vst.msk [vmem:[#allocation5 + $0x8] sm:$0xff] %vm47, %v1099
    %v1102 = vld [vmem:[%s125 + $0x8] sm:$0xff]
    %v1103 = vld [vmem:[%s336 + $0x8] sm:$0xff]
    %v1104 = vld [vmem:[%s542 + $0x8] sm:$0xff]
    %1105 = vxpose.xlu0.b32.start [1/16] %v1102, 128
    %1106 = vxpose.xlu0.b32.cont [2/16] 0.0, 128
    %1107 = vxpose.xlu0.b32.cont [3/16] 0.0, 128
    %1108 = vxpose.xlu0.b32.cont [4/16] 0.0, 128
    %1109 = vxpose.xlu0.b32.cont [5/16] 0.0, 128
    %1110 = vxpose.xlu0.b32.cont [6/16] 0.0, 128
    %1111 = vxpose.xlu0.b32.cont [7/16] 0.0, 128
    %1112 = vxpose.xlu0.b32.cont [8/16] 0.0, 128
    %1113 = vxpose.xlu0.b32.cont [9/16] 0.0, 128
    %1114 = vxpose.xlu0.b32.cont [10/16] 0.0, 128
    %1115 = vxpose.xlu0.b32.cont [11/16] 0.0, 128
    %1116 = vxpose.xlu0.b32.cont [12/16] 0.0, 128
    %1117 = vxpose.xlu0.b32.cont [13/16] 0.0, 128
    %1118 = vxpose.xlu0.b32.cont [14/16] 0.0, 128
    %1119 = vxpose.xlu0.b32.cont [15/16] 0.0, 128
    %1120 = vxpose.xlu0.b32.end [16/16] 0.0, 128
    %v1121 = vpop.trf.xlu0
    %v1122 = vpop.trf.xlu0
    %v1123 = vpop.trf.xlu0
    %v1124 = vpop.trf.xlu0
    %v1125 = vpop.trf.xlu0
    %v1126 = vpop.trf.xlu0
    %v1127 = vpop.trf.xlu0
    %v1128 = vpop.trf.xlu0
    %v1129 = vpop.trf.xlu0
    %v1130 = vpop.trf.xlu0
    %v1131 = vpop.trf.xlu0
    %v1132 = vpop.trf.xlu0
    %v1133 = vpop.trf.xlu0
    %v1134 = vpop.trf.xlu0
    %v1135 = vpop.trf.xlu0
    %v1136 = vpop.trf.xlu0
    %v1138 = vsel %vm688, %v1121, 0
    %v1141 = vsel %vm688, %v1122, 0
    %1143 = vmatpush.msra.mxu0 0.0
    %1144 = vmatpush.msra.mxu0 0.0
    %1145 = vmatpush.msra.mxu0 0.0
    %1146 = vmatpush.msra.mxu0 0.0
    %1147 = vmatpush.msra.mxu0 0.0
    %1148 = vmatpush.msra.mxu0 0.0
    %1149 = vmatpush.msra.mxu0 0.0
    %1150 = vmatpush.msra.mxu0 0.0
    %1151 = vmatpush.msra.mxu0 0.0
    %1152 = vmatpush.msra.mxu0 0.0
    %1153 = vmatpush.msra.mxu0 0.0
    %1154 = vmatpush.msra.mxu0 0.0
    %1155 = vmatpush.msra.mxu0 0.0
    %1156 = vmatpush.msra.mxu0 0.0
    %1157 = vmatpush.msra.mxu0 0.0
    %1158 = vmatpush.msra.mxu0 %v1103
    %1159 = vmatmul.f32.gmra.mxu0 %v1138
    %v1160 = vpop.f32.mrf.mxu0
    %v1161 = vadd.f32 0.0, %v1160
    %1162 = vmatmul.f32.gmra.mxu0 %v1141
    %v1163 = vpop.f32.mrf.mxu0
    %v1164 = vadd.f32 0.0, %v1163
    %1165 = vdwg.mxu0
    %v1166 = vsel %vm47, %v1161, -inf
    %1167 = vmax.xlane.f32.xlu0 %v1166
    %v1168 = vpop.xlane.xlu0 %1167
    %v1169 = vsel %vm47, %v1164, -inf
    %1170 = vmax.xlane.f32.xlu0 %v1169
    %v1171 = vpop.xlane.xlu0 %1170
    %v1172 = vsub.f32 %v1161, %v1168
    %v1173 = vsub.f32 %v1164, %v1171
    %v1174 = vmul.f32 %v1172, 1.442695
    %v1175 = vpow.pop %v1174
    %v1176 = vmul.f32 %v1173, 1.442695
    %v1177 = vpow.pop %v1176
    %v1178 = vsel %vm47, %v1175, 0.0
    %1179 = vadd.xlane.f32.xlu0 %v1178
    %v1180 = vpop.xlane.xlu0 %1179
    %v1181 = vsel %vm47, %v1177, 0.0
    %1182 = vadd.xlane.f32.xlu0 %v1181
    %v1183 = vpop.xlane.xlu0 %1182
    %v1184 = vrcp.pop %v1180
    %v1185 = vmul.f32 %v1180, %v1184
    %v1186 = vsub.f32 1.0, %v1185
    %v1187 = vmul.f32 %v1184, %v1186
    %v1188 = vadd.f32 %v1184, %v1187
    %vm1189 = vweird.f32 %v1180
    %vm1190 = vweird.f32 %v1184
    %vm1191 = vmor %vm1189, %vm1190
    %v1192 = vsel %vm1191, %v1184, %v1188
    %v1193 = vand.u32 2147483647, %v1180
    %vm1194 = vcmp.eq.f32.partialorder %v1193, 8.507059e+37
    %v1195 = vand.u32 %v1180, 2147483648
    %v1196 = vor.u32 1.1754944e-38, %v1195
    %v1197 = vsel %vm1194, %v1196, %v1192
    %v1198 = vmul.f32 %v1175, %v1197
    %v1199 = vrcp.pop %v1183
    %v1200 = vmul.f32 %v1183, %v1199
    %v1201 = vsub.f32 1.0, %v1200
    %v1202 = vmul.f32 %v1199, %v1201
    %v1203 = vadd.f32 %v1199, %v1202
    %vm1204 = vweird.f32 %v1183
    %vm1205 = vweird.f32 %v1199
    %vm1206 = vmor %vm1204, %vm1205
    %v1207 = vsel %vm1206, %v1199, %v1203
    %v1208 = vand.u32 2147483647, %v1183
    %vm1209 = vcmp.eq.f32.partialorder %v1208, 8.507059e+37
    %v1210 = vand.u32 %v1183, 2147483648
    %v1211 = vor.u32 1.1754944e-38, %v1210
    %v1212 = vsel %vm1209, %v1211, %v1207
    %v1213 = vmul.f32 %v1177, %v1212
    %v1214 = vld [vmem:[%s937] sm:$0xff]
    %v1215 = vsub.f32 0.0, %v1214
    %v1216 = vmul.f32 %v1215, 1.442695
    %v1217 = vpow.pop %v1216
    %v1218 = vadd.f32 %v1217, 1.0
    %v1219 = vrcp.pop %v1218
    %v1220 = vmul.f32 %v1218, %v1219
    %v1221 = vsub.f32 1.0, %v1220
    %v1222 = vmul.f32 %v1219, %v1221
    %v1223 = vadd.f32 %v1219, %v1222
    %vm1224 = vweird.f32 %v1218
    %vm1225 = vweird.f32 %v1219
    %vm1226 = vmor %vm1224, %vm1225
    %v1227 = vsel %vm1226, %v1219, %v1223
    %v1228 = vand.u32 2147483647, %v1218
    %vm1229 = vcmp.eq.f32.partialorder %v1228, 8.507059e+37
    %v1230 = vand.u32 %v1218, 2147483648
    %v1231 = vor.u32 1.1754944e-38, %v1230
    %v1232 = vsel %vm1229, %v1231, %v1227
    %v1233 = vmul.f32 1.0, %v1232
    %v1234 = vmul.f32 %v1104, %v1233
    %v1236 = vsel %vm47, %v1234, 0
    %v1239 = vsel %vm47, %v1198, 0
    %v1242 = vsel %vm47, %v1213, 0
    %1244 = vmatpush.xpose.msra.mxu0 0.0
    %1245 = vmatpush.xpose.msra.mxu0 0.0
    %1246 = vmatpush.xpose.msra.mxu0 0.0
    %1247 = vmatpush.xpose.msra.mxu0 0.0
    %1248 = vmatpush.xpose.msra.mxu0 0.0
    %1249 = vmatpush.xpose.msra.mxu0 0.0
    %1250 = vmatpush.xpose.msra.mxu0 0.0
    %1251 = vmatpush.xpose.msra.mxu0 0.0
    %1252 = vmatpush.xpose.msra.mxu0 0.0
    %1253 = vmatpush.xpose.msra.mxu0 0.0
    %1254 = vmatpush.xpose.msra.mxu0 0.0
    %1255 = vmatpush.xpose.msra.mxu0 0.0
    %1256 = vmatpush.xpose.msra.mxu0 0.0
    %1257 = vmatpush.xpose.msra.mxu0 0.0
    %1258 = vmatpush.xpose.msra.mxu0 %v1242
    %1259 = vmatpush.xpose.msra.mxu0 %v1239
    %1260 = vmatmul.f32.gmra.mxu0 %v1236
    %v1261 = vpop.f32.mrf.mxu0
    %v1262 = vadd.f32 0.0, %v1261
    %1263 = vdwg.mxu0
    %1264 = vst.msk [vmem:[%s937 + $0x8] sm:$0xff] %vm47, %v1262
    %s1265 = scalar_lea.vmem %s3, 48
    %v1266 = vld [vmem:[%s1265] sm:$0xff]
    %v1267 = vld [vmem:[%s1265 + $0x8] sm:$0xff]
    %v1268 = vld [vmem:[#allocation5] sm:$0xff]
    %v1269 = vld [vmem:[#allocation5 + $0x8] sm:$0xff]
    %s1270 = scalar_lea.vmem %s4, 48
    %v1271 = vld [vmem:[%s1270] sm:$0xff]
    %v1272 = vld [vmem:[%s1270 + $0x8] sm:$0xff]
    %1274 = vset.pattern.permute.xlu0 0
    %1275 = vperm.xlu0 %1274, %v1271
    %v1276 = vpop.permute.xlu0 %1275
    %1279 = vset.pattern.permute.xlu0 0
    %1280 = vperm.xlu0 %1279, %v1272
    %v1281 = vpop.permute.xlu0 %1280
    %v1284 = vsel %vm47, %v1266, 0
    %v1287 = vsel %vm47, %v1267, 0
    %1289 = vmatpush.msra.mxu0 0.0
    %1290 = vmatpush.msra.mxu0 0.0
    %1291 = vmatpush.msra.mxu0 0.0
    %1292 = vmatpush.msra.mxu0 0.0
    %1293 = vmatpush.msra.mxu0 0.0
    %1294 = vmatpush.msra.mxu0 0.0
    %1295 = vmatpush.msra.mxu0 0.0
    %1296 = vmatpush.msra.mxu0 0.0
    %1297 = vmatpush.msra.mxu0 0.0
    %1298 = vmatpush.msra.mxu0 0.0
    %1299 = vmatpush.msra.mxu0 0.0
    %1300 = vmatpush.msra.mxu0 0.0
    %1301 = vmatpush.msra.mxu0 0.0
    %1302 = vmatpush.msra.mxu0 0.0
    %1303 = vmatpush.msra.mxu0 %v1269
    %1304 = vmatpush.msra.mxu0 %v1268
    %1305 = vmatmul.f32.gmra.mxu0 %v1284
    %v1306 = vpop.f32.mrf.mxu0
    %v1307 = vadd.f32 %v1276, %v1306
    %1308 = vmatmul.f32.gmra.mxu0 %v1287
    %v1309 = vpop.f32.mrf.mxu0
    %v1310 = vadd.f32 %v1281, %v1309
    %1311 = vdwg.mxu0
    %1312 = vst.msk [vmem:[#allocation7] sm:$0xff] %vm47, %v1307
    %1313 = vst.msk [vmem:[#allocation7 + $0x8] sm:$0xff] %vm47, %v1310
    %v1314 = vld [vmem:[%s1265] sm:$0xff]
    %v1315 = vld [vmem:[%s1265 + $0x8] sm:$0xff]
    %v1316 = vld [vmem:[%s937] sm:$0xff]
    %v1317 = vld [vmem:[%s937 + $0x8] sm:$0xff]
    %v1318 = vld [vmem:[%s1270] sm:$0xff]
    %v1319 = vld [vmem:[%s1270 + $0x8] sm:$0xff]
    %1321 = vset.pattern.permute.xlu0 0
    %1322 = vperm.xlu0 %1321, %v1318
    %v1323 = vpop.permute.xlu0 %1322
    %1326 = vset.pattern.permute.xlu0 0
    %1327 = vperm.xlu0 %1326, %v1319
    %v1328 = vpop.permute.xlu0 %1327
    %v1331 = vsel %vm47, %v1314, 0
    %v1334 = vsel %vm47, %v1315, 0
    %1336 = vmatpush.msra.mxu0 0.0
    %1337 = vmatpush.msra.mxu0 0.0
    %1338 = vmatpush.msra.mxu0 0.0
    %1339 = vmatpush.msra.mxu0 0.0
    %1340 = vmatpush.msra.mxu0 0.0
    %1341 = vmatpush.msra.mxu0 0.0
    %1342 = vmatpush.msra.mxu0 0.0
    %1343 = vmatpush.msra.mxu0 0.0
    %1344 = vmatpush.msra.mxu0 0.0
    %1345 = vmatpush.msra.mxu0 0.0
    %1346 = vmatpush.msra.mxu0 0.0
    %1347 = vmatpush.msra.mxu0 0.0
    %1348 = vmatpush.msra.mxu0 0.0
    %1349 = vmatpush.msra.mxu0 0.0
    %1350 = vmatpush.msra.mxu0 %v1317
    %1351 = vmatpush.msra.mxu0 %v1316
    %1352 = vmatmul.f32.gmra.mxu0 %v1331
    %v1353 = vpop.f32.mrf.mxu0
    %v1354 = vadd.f32 %v1323, %v1353
    %1355 = vmatmul.f32.gmra.mxu0 %v1334
    %v1356 = vpop.f32.mrf.mxu0
    %v1357 = vadd.f32 %v1328, %v1356
    %1358 = vdwg.mxu0
    %s1359 = scalar_lea.vmem [#allocation7], 16
    %1360 = vst.msk [vmem:[%s1359] sm:$0xff] %vm47, %v1354
    %1361 = vst.msk [vmem:[%s1359 + $0x8] sm:$0xff] %vm47, %v1357
    %v1362 = vld [vmem:[#allocation7] sm:$0xff]
    %v1363 = vld [vmem:[#allocation7 + $0x8] sm:$0xff]
    %v1364 = vld [vmem:[#allocation7 + $0x10] sm:$0xff]
    %v1365 = vld [vmem:[#allocation7 + $0x18] sm:$0xff]
    %v1366 = vsel %vm47, %v1362, 0.0
    %v1367 = vsel %vm47, %v1364, 0.0
    %v1368 = vadd.f32 %v1366, %v1367
    %v1369 = vsel %vm47, %v1363, 0.0
    %v1370 = vsel %vm47, %v1365, 0.0
    %v1371 = vadd.f32 %v1369, %v1370
    %v1372 = vsel %vm47, %v1368, 0.0
    %1373 = vadd.xlane.f32.xlu0 %v1372
    %v1374 = vpop.xlane.xlu0 %1373
    %v1375 = vsel %vm47, %v1371, 0.0
    %1376 = vadd.xlane.f32.xlu0 %v1375
    %v1377 = vpop.xlane.xlu0 %1376
    %v1378 = vmul.f32 %v1374, %v150
    %v1379 = vmul.f32 %v1377, %v150
    %v1380 = vsub.f32 %v1362, %v1378
    %v1381 = vsub.f32 %v1363, %v1379
    %v1382 = vsub.f32 %v1364, %v1378
    %v1383 = vsub.f32 %v1365, %v1379
    %v1384 = vmul.f32 %v1380, %v1380
    %v1385 = vmul.f32 %v1381, %v1381
    %v1386 = vmul.f32 %v1382, %v1382
    %v1387 = vmul.f32 %v1383, %v1383
    %v1388 = vsel %vm47, %v1384, 0.0
    %v1389 = vsel %vm47, %v1386, 0.0
    %v1390 = vadd.f32 %v1388, %v1389
    %v1391 = vsel %vm47, %v1385, 0.0
    %v1392 = vsel %vm47, %v1387, 0.0
    %v1393 = vadd.f32 %v1391, %v1392
    %v1394 = vsel %vm47, %v1390, 0.0
    %1395 = vadd.xlane.f32.xlu0 %v1394
    %v1396 = vpop.xlane.xlu0 %1395
    %v1397 = vsel %vm47, %v1393, 0.0
    %1398 = vadd.xlane.f32.xlu0 %v1397
    %v1399 = vpop.xlane.xlu0 %1398
    %v1400 = vmul.f32 %v1396, %v150
    %v1401 = vmul.f32 %v1399, %v150
    %v1402 = vadd.f32 %v1400, 1e-05
    %v1403 = vadd.f32 %v1401, 1e-05
    %v1404 = vrsqrt.pop %v1402
    %v1405 = vmul.f32 %v1404, %v1402
    %v1406 = vmul.f32 %v1405, %v1404
    %v1407 = vmul.f32 0.5, %v1406
    %v1408 = vsub.f32 1.5, %v1407
    %v1409 = vmul.f32 %v1404, %v1408
    %vm1410 = vweird.f32 %v1402
    %vm1411 = vweird.f32 %v1404
    %vm1412 = vmor %vm1410, %vm1411
    %v1413 = vsel %vm1412, %v1404, %v1409
    %v1414 = vrsqrt.pop %v1403
    %v1415 = vmul.f32 %v1414, %v1403
    %v1416 = vmul.f32 %v1415, %v1414
    %v1417 = vmul.f32 0.5, %v1416
    %v1418 = vsub.f32 1.5, %v1417
    %v1419 = vmul.f32 %v1414, %v1418
    %vm1420 = vweird.f32 %v1403
    %vm1421 = vweird.f32 %v1414
    %vm1422 = vmor %vm1420, %vm1421
    %v1423 = vsel %vm1422, %v1414, %v1419
    %v1424 = vmul.f32 %v1380, %v1413
    %v1425 = vmul.f32 %v1381, %v1423
    %v1426 = vmul.f32 %v1382, %v1413
    %v1427 = vmul.f32 %v1383, %v1423
    %s1428 = scalar_lea.vmem %s5, 48
    %v1429 = vld [vmem:[%s1428] sm:$0xff]
    %v1430 = vld [vmem:[%s1428 + $0x8] sm:$0xff]
    %1432 = vset.pattern.permute.xlu0 0
    %1433 = vperm.xlu0 %1432, %v1429
    %v1434 = vpop.permute.xlu0 %1433
    %1437 = vset.pattern.permute.xlu0 0
    %1438 = vperm.xlu0 %1437, %v1430
    %v1439 = vpop.permute.xlu0 %1438
    %v1441 = vmul.f32 %v1424, %v1434
    %v1442 = vmul.f32 %v1425, %v1439
    %v1443 = vmul.f32 %v1426, %v1434
    %v1444 = vmul.f32 %v1427, %v1439
    %s1445 = scalar_lea.vmem %s6, 48
    %v1446 = vld [vmem:[%s1445] sm:$0xff]
    %v1447 = vld [vmem:[%s1445 + $0x8] sm:$0xff]
    %1449 = vset.pattern.permute.xlu0 0
    %1450 = vperm.xlu0 %1449, %v1446
    %v1451 = vpop.permute.xlu0 %1450
    %1454 = vset.pattern.permute.xlu0 0
    %1455 = vperm.xlu0 %1454, %v1447
    %v1456 = vpop.permute.xlu0 %1455
    %v1458 = vadd.f32 %v1441, %v1451
    %v1459 = vadd.f32 %v1442, %v1456
    %v1460 = vadd.f32 %v1443, %v1451
    %v1461 = vadd.f32 %v1444, %v1456
    %v1462 = vmax.f32 %v1458, 0.0
    %v1463 = vmax.f32 %v1459, 0.0
    %v1464 = vmax.f32 %v1460, 0.0
    %v1465 = vmax.f32 %v1461, 0.0
    %1466 = vst.msk [vmem:[#allocation7] sm:$0xff] %vm47, %v1462
    %1467 = vst.msk [vmem:[#allocation7 + $0x8] sm:$0xff] %vm47, %v1463
    %1468 = vst.msk [vmem:[#allocation7 + $0x10] sm:$0xff] %vm47, %v1464
    %1469 = vst.msk [vmem:[#allocation7 + $0x18] sm:$0xff] %vm47, %v1465
    %v1470 = vld [vmem:[%s2] sm:$0xff]
    %v1471 = vld [vmem:[%s2 + $0x8] sm:$0xff]
    %v1472 = vld [vmem:[%s2 + $0x10] sm:$0xff]
    %v1473 = vld [vmem:[%s2 + $0x18] sm:$0xff]
    %s1474 = sld [smem:[#allocation6]]
    %v1475 = vld [vmem:[#allocation7] sm:$0xff]
    %v1476 = vld [vmem:[#allocation7 + $0x8] sm:$0xff]
    %v1477 = vld [vmem:[#allocation7 + $0x10] sm:$0xff]
    %v1478 = vld [vmem:[#allocation7 + $0x18] sm:$0xff]
    %v1479 = vstv %s1474
    %v1480 = vmul.f32 %v1479, %v1475
    %v1481 = vmul.f32 %v1479, %v1476
    %v1482 = vmul.f32 %v1479, %v1477
    %v1483 = vmul.f32 %v1479, %v1478
    %v1484 = vadd.f32 %v1470, %v1480
    %v1485 = vadd.f32 %v1471, %v1481
    %v1486 = vadd.f32 %v1472, %v1482
    %v1487 = vadd.f32 %v1473, %v1483
    %1488 = vst.msk [vmem:[#allocation7] sm:$0xff] %vm47, %v1484
    %1489 = vst.msk [vmem:[#allocation7 + $0x8] sm:$0xff] %vm47, %v1485
    %1490 = vst.msk [vmem:[#allocation7 + $0x10] sm:$0xff] %vm47, %v1486
    %1491 = vst.msk [vmem:[#allocation7 + $0x18] sm:$0xff] %vm47, %v1487
    // Predicated region
    $region34: #{mh_attention_forward.1} parent=1 // pred_check
      _
    $region35: #{mh_attention_forward.1} parent=1 // pred_check_branch
      %1493 = sbr.rel (0) target = $region37
    $region36: #{mh_attention_forward.1} parent=1 // pred_region
      %1495 = vsyncadd [#allocation8], 0
      %s1496 = sshll.u32 [#allocation7], 4
      %s1497 = int_to_ptr.vmem [resolvable:$true] %s1496
      %s1498 = sshll.u32 %s8, 4
      %s1499 = int_to_ptr.hbm [resolvable:$true] %s1498
      %1504 = dma.vmem_to_hbm [thread:$0]  %s1497, 512, %s1499, [#allocation8], 128, 128, 8
    $region37: #{mh_attention_forward.1} parent=1 // pred_fallthru
      _
    // Predicated region
    $region38: #{mh_attention_forward.1} parent=1 // pred_check
      _
    $region39: #{mh_attention_forward.1} parent=1 // pred_check_branch
      %1506 = sbr.rel (0) target = $region41
    $region40: #{mh_attention_forward.1} parent=1 // pred_region
      %1508 = dma.done [#allocation8], 512
    $region41: #{mh_attention_forward.1} parent=1 // pred_fallthru
      _
    %1509 = vsyncpa [#allocation8], 1

</llo_original>
